<compile_context>
chip_gen: v5e
topology: v5e:2x2
jax: 0.10.0
libtpu: 0.0.40
codegen_flags: <defaults>
</compile_context>

<pallas_src>
import functools

import jax
import jax.numpy as jnp
from jax import lax
from jax.experimental import pallas as pl
from jax.experimental.pallas import tpu as pltpu


def _supcon_kernel(qh_ref, ql_ref, kh_ref, kl_ref, labq_ref, labk_ref, valid_ref,
                   l_ref, p_ref, *, inv_temp):
    """One (TQ, TK) Gram tile: stream denominator / positive-logit sums per query row."""
    ki = pl.program_id(1)

    @pl.when(ki == 0)
    def _init():
        l_ref[...] = jnp.zeros_like(l_ref)
        p_ref[...] = jnp.zeros_like(p_ref)

    dn = (((1,), (1,)), ((), ()))
    qh = qh_ref[...]
    ql = ql_ref[...]
    kh = kh_ref[...]
    kl = kl_ref[...]
    # bf16x3 split matmul (MXU-native, f32 accumulate): (qh+ql)(kh+kl)^T, drop ql*kl.
    s = lax.dot_general(qh, kh, dn, preferred_element_type=jnp.float32)
    s = s + lax.dot_general(qh, kl, dn, preferred_element_type=jnp.float32)
    s = s + lax.dot_general(ql, kh, dn, preferred_element_type=jnp.float32)      # (TQ, TK)

    valid = valid_ref[...] != 0                            # (1, TK) real (non-pad) columns
    mask = (labq_ref[...] == labk_ref[...]) & valid        # (TQ, TK) same-label columns

    # After unit normalization the row max of anchor_dot_contrast is the diagonal = 1/T;
    # the shift cancels exactly in the loss, so a constant shift is used (no running max).
    e = jnp.where(valid, jnp.exp(s - inv_temp), 0.0)
    l_ref[...] += jnp.sum(e, axis=1, keepdims=True)
    p_ref[...] += jnp.sum(jnp.where(mask, s, 0.0), axis=1, keepdims=True)


def _round_up(x, m):
    return ((x + m - 1) // m) * m


def supcon_loss7(worstk, features, labels, temperature=0.5):
    """SupConLoss7.forward. `worstk` is accepted but unused (matches the PyTorch module).

    features: float [B, D]; labels: int [B]. Returns the scalar loss.
    """
    del worstk  # unused by the reference forward pass
    B, D = features.shape
    inv_t = 1.0 / float(temperature)

    # ---- O(B*D) prologue (XLA): normalize once, fold 1/sqrt(T), split to bf16 hi/lo ----
    f = features.astype(jnp.float32)
    norm = jnp.sqrt(jnp.sum(f * f, axis=1, keepdims=True))
    fs = (f / jnp.maximum(norm, 1e-12)) * (float(temperature) ** -0.5)
    f_hi = fs.astype(jnp.bfloat16)
    f_lo = (fs - f_hi.astype(jnp.float32)).astype(jnp.bfloat16)

    # ---- tile selection: small TQ so nq >= 2 (megacore), large TK to amortize per-step
    #      overhead; pad B so every tile is full (padded columns masked out). ----
    if B > 256:
        TQ, TK = 256, 512
    elif B > 128:
        TQ, TK = 128, 256
    else:
        TQ, TK = 128, 128
    Bp = _round_up(B, max(TQ, TK))
    pad = Bp - B

    lab = labels.reshape(-1).astype(jnp.int32)
    if pad:
        f_hi = jnp.pad(f_hi, ((0, pad), (0, 0)))
        f_lo = jnp.pad(f_lo, ((0, pad), (0, 0)))
        lab_p = jnp.pad(lab, (0, pad))
    else:
        lab_p = lab
    lab_col = lab_p.reshape(Bp, 1)
    lab_row = lab_p.reshape(1, Bp)
    valid = (jnp.arange(Bp, dtype=jnp.int32) < B).astype(jnp.int32).reshape(1, Bp)

    nq = Bp // TQ
    nk = Bp // TK

    kernel = functools.partial(_supcon_kernel, inv_temp=inv_t)
    l_acc, p_acc = pl.pallas_call(
        kernel,
        out_shape=[
            jax.ShapeDtypeStruct((Bp, 1), jnp.float32),   # L_i = sum_j exp(s_ij - 1/T)
            jax.ShapeDtypeStruct((Bp, 1), jnp.float32),   # P_i = sum_{same label} s_ij
        ],
        grid_spec=pltpu.PrefetchScalarGridSpec(
            num_scalar_prefetch=0,
            grid=(nq, nk),
            in_specs=[
                pl.BlockSpec((TQ, D), lambda qi, ki: (qi, 0)),   # q hi (resident per qi)
                pl.BlockSpec((TQ, D), lambda qi, ki: (qi, 0)),   # q lo
                pl.BlockSpec((TK, D), lambda qi, ki: (ki, 0)),   # k hi (streamed)
                pl.BlockSpec((TK, D), lambda qi, ki: (ki, 0)),   # k lo
                pl.BlockSpec((TQ, 1), lambda qi, ki: (qi, 0)),   # labels column
                pl.BlockSpec((1, TK), lambda qi, ki: (0, ki)),   # labels row
                pl.BlockSpec((1, TK), lambda qi, ki: (0, ki)),   # valid-column mask
            ],
            out_specs=[
                pl.BlockSpec((TQ, 1), lambda qi, ki: (qi, 0)),
                pl.BlockSpec((TQ, 1), lambda qi, ki: (qi, 0)),
            ],
        ),
        compiler_params=pltpu.CompilerParams(
            dimension_semantics=("parallel", "arbitrary"),
        ),
        cost_estimate=pl.CostEstimate(
            flops=3 * 2 * Bp * Bp * D,
            transcendentals=Bp * Bp,
            bytes_accessed=nq * Bp * D * 4 + Bp * D * 4 + 8 * Bp,
        ),
    )(f_hi, f_lo, f_hi, f_lo, lab_col, lab_row, valid)

    # ---- O(B) epilogue: analytic diagonal removal + per-row loss assembly --------------
    L = l_acc[:B, 0] - 1.0          # remove diagonal: exp(s_ii - 1/T) == 1
    P = p_acc[:B, 0] - inv_t        # remove diagonal: s_ii == 1/T (mask_ii == 1 always)
    sorted_lab = jnp.sort(lab)
    num_pos = (jnp.searchsorted(sorted_lab, lab, side="right")
               - jnp.searchsorted(sorted_lab, lab, side="left") - 1).astype(jnp.float32)
    # sum_pos log_probs = sum_pos (s - 1/T - log(L)) = (P) - num_pos * (1/T + log(L))
    row = P - num_pos * (inv_t + jnp.log(L))
    has_pos = num_pos > 0.0
    per_row = jnp.where(has_pos, row / jnp.where(has_pos, num_pos, 1.0), 0.0)
    # TODO(synk): the PyTorch module raises on NaN log_probs; a data-dependent host
    # exception cannot be raised from a TPU kernel, so NaN propagates silently instead.
    return -jnp.sum(per_row) / jnp.sum(has_pos.astype(jnp.float32))


def _reference(features, labels, temperature=0.5):
    # Pure-JAX reference matching the PyTorch forward exactly (f32 end to end).
    f = features.astype(jnp.float32)
    fn = f / jnp.maximum(jnp.sqrt(jnp.sum(f * f, axis=1, keepdims=True)), 1e-12)
    B = f.shape[0]
    adc = (fn @ fn.T) / temperature
    logits = adc - jnp.max(adc, axis=1, keepdims=True)
    exp_logits = jnp.exp(logits)
    mask = (labels[:, None] == labels[None, :]).astype(jnp.float32)
    logits_mask = 1.0 - jnp.eye(B, dtype=jnp.float32)
    pos = mask * logits_mask
    neg = 1.0 - mask
    num_pos = jnp.sum(pos, axis=1)
    denom = jnp.sum(exp_logits * neg, axis=1, keepdims=True) + \
            jnp.sum(exp_logits * pos, axis=1, keepdims=True)
    log_probs = logits - jnp.log(denom)
    row = jnp.sum(log_probs * pos, axis=1)
    valid = num_pos > 0
    per_row = jnp.where(valid, row / jnp.where(valid, num_pos, 1.0), 0.0)
    return -jnp.sum(per_row) / jnp.sum(valid.astype(jnp.float32))


if __name__ == "__main__":
    key = jax.random.PRNGKey(0)
    kf, kl_, kw = jax.random.split(key, 3)

    D = 128
    for B in (256, 200):   # tile-multiple batch and a padded (non-multiple) batch
        features = jax.random.normal(kf, (B, D), dtype=jnp.float32)
        labels = jax.random.randint(kl_, (B,), 0, 8, dtype=jnp.int32)
        worstk = jax.random.normal(kw, (B,), dtype=jnp.float32)   # unused by forward

        loss = supcon_loss7(worstk, features, labels, temperature=0.5)
        jax.block_until_ready(loss)

        ref = _reference(features, labels, temperature=0.5)
        assert jnp.allclose(loss, ref, rtol=1e-4, atol=1e-4), (B, loss, ref)

    print("KERNEL_OK")
</pallas_src>

<mosaic_0001>
module attributes {stable_mosaic.version = 11 : i64} {
  func.func @_supcon_kernel(%arg0: i32, %arg1: i32, %arg2: memref<128x128xbf16, #tpu.memory_space<vmem>>, %arg3: memref<128x128xbf16, #tpu.memory_space<vmem>>, %arg4: memref<256x128xbf16, #tpu.memory_space<vmem>>, %arg5: memref<256x128xbf16, #tpu.memory_space<vmem>>, %arg6: memref<128x1xi32, #tpu.memory_space<vmem>>, %arg7: memref<1x256xi32, #tpu.memory_space<vmem>>, %arg8: memref<1x256xi32, #tpu.memory_space<vmem>>, %arg9: memref<128x1xf32, #tpu.memory_space<vmem>>, %arg10: memref<128x1xf32, #tpu.memory_space<vmem>>) attributes {dimension_semantics = [#tpu.dimension_semantics<parallel>, #tpu.dimension_semantics<arbitrary>], iteration_bounds = array<i64: 2, 1>, scalar_prefetch = 0 : i64, scratch_operands = 0 : i64, tpu.core_type = #tpu.core_type<tc>, window_params = [{transform_indices = @transform_0, window_bounds = array<i64: 128, 128>}, {transform_indices = @transform_1, window_bounds = array<i64: 128, 128>}, {transform_indices = @transform_2, window_bounds = array<i64: 256, 128>}, {transform_indices = @transform_3, window_bounds = array<i64: 256, 128>}, {transform_indices = @transform_4, window_bounds = array<i64: 128, 1>}, {transform_indices = @transform_5, window_bounds = array<i64: 1, 256>}, {transform_indices = @transform_6, window_bounds = array<i64: 1, 256>}, {transform_indices = @transform_7, window_bounds = array<i64: 128, 1>}, {transform_indices = @transform_8, window_bounds = array<i64: 128, 1>}]} {
    %c0_i32 = arith.constant 0 : i32
    %0 = arith.cmpi eq, %arg1, %c0_i32 : i32
    %1 = arith.extui %0 : i1 to i32
    %c0_i32_0 = arith.constant 0 : i32
    %2 = arith.cmpi ne, %1, %c0_i32_0 : i32
    scf.if %2 {
      %cst_30 = arith.constant 0.000000e+00 : f32
      %41 = vector.broadcast %cst_30 : f32 to vector<128x1xf32>
      %c0_31 = arith.constant 0 : index
      %c0_32 = arith.constant 0 : index
      %42 = vector.load %arg9[%c0_31, %c0_32] : memref<128x1xf32, #tpu.memory_space<vmem>>, vector<128x1xf32>
      tpu.vector_store %arg9[%c0_31, %c0_32], %41 {strides = array<i32>} : memref<128x1xf32, #tpu.memory_space<vmem>>, vector<128x1xf32>,
      %cst_33 = arith.constant 0.000000e+00 : f32
      %43 = vector.broadcast %cst_33 : f32 to vector<128x1xf32>
      %c0_34 = arith.constant 0 : index
      %c0_35 = arith.constant 0 : index
      %44 = vector.load %arg10[%c0_34, %c0_35] : memref<128x1xf32, #tpu.memory_space<vmem>>, vector<128x1xf32>
      tpu.vector_store %arg10[%c0_34, %c0_35], %43 {strides = array<i32>} : memref<128x1xf32, #tpu.memory_space<vmem>>, vector<128x1xf32>,
    } else {
    }
    %c0 = arith.constant 0 : index
    %c0_1 = arith.constant 0 : index
    %3 = vector.load %arg2[%c0, %c0_1] : memref<128x128xbf16, #tpu.memory_space<vmem>>, vector<128x128xbf16>
    %c0_2 = arith.constant 0 : index
    %c0_3 = arith.constant 0 : index
    %4 = vector.load %arg3[%c0_2, %c0_3] : memref<128x128xbf16, #tpu.memory_space<vmem>>, vector<128x128xbf16>
    %c0_4 = arith.constant 0 : index
    %c0_5 = arith.constant 0 : index
    %5 = vector.load %arg4[%c0_4, %c0_5] : memref<256x128xbf16, #tpu.memory_space<vmem>>, vector<256x128xbf16>
    %c0_6 = arith.constant 0 : index
    %c0_7 = arith.constant 0 : index
    %6 = vector.load %arg5[%c0_6, %c0_7] : memref<256x128xbf16, #tpu.memory_space<vmem>>, vector<256x128xbf16>
    %cst = arith.constant dense<0.000000e+00> : vector<128x256xf32>
    %7 = tpu.matmul %3, %5, %cst {dimension_numbers = #tpu.dot_dimension_numbers<[1], [1], [0], [0], [0, 0, 1, 0], [], []>} : vector<128x128xbf16>, vector<256x128xbf16>, vector<128x256xf32> -> vector<128x256xf32>
    %cst_8 = arith.constant dense<0.000000e+00> : vector<128x256xf32>
    %8 = tpu.matmul %3, %6, %cst_8 {dimension_numbers = #tpu.dot_dimension_numbers<[1], [1], [0], [0], [0, 0, 1, 0], [], []>} : vector<128x128xbf16>, vector<256x128xbf16>, vector<128x256xf32> -> vector<128x256xf32>
    %9 = arith.addf %7, %8 : vector<128x256xf32>
    %cst_9 = arith.constant dense<0.000000e+00> : vector<128x256xf32>
    %10 = tpu.matmul %4, %5, %cst_9 {dimension_numbers = #tpu.dot_dimension_numbers<[1], [1], [0], [0], [0, 0, 1, 0], [], []>} : vector<128x128xbf16>, vector<256x128xbf16>, vector<128x256xf32> -> vector<128x256xf32>
    %11 = arith.addf %9, %10 : vector<128x256xf32>
    %c0_10 = arith.constant 0 : index
    %c0_11 = arith.constant 0 : index
    %12 = vector.load %arg8[%c0_10, %c0_11] : memref<1x256xi32, #tpu.memory_space<vmem>>, vector<1x256xi32>
    %c0_i32_12 = arith.constant 0 : i32
    %13 = vector.broadcast %c0_i32_12 : i32 to vector<1x256xi32>
    %14 = arith.cmpi ne, %12, %13 : vector<1x256xi32>
    %c0_13 = arith.constant 0 : index
    %c0_14 = arith.constant 0 : index
    %15 = vector.load %arg6[%c0_13, %c0_14] : memref<128x1xi32, #tpu.memory_space<vmem>>, vector<128x1xi32>
    %c0_15 = arith.constant 0 : index
    %c0_16 = arith.constant 0 : index
    %16 = vector.load %arg7[%c0_15, %c0_16] : memref<1x256xi32, #tpu.memory_space<vmem>>, vector<1x256xi32>
    %17 = vector.broadcast %15 : vector<128x1xi32> to vector<128x256xi32>
    %18 = vector.broadcast %16 : vector<1x256xi32> to vector<128x256xi32>
    %19 = arith.cmpi eq, %17, %18 : vector<128x256xi32>
    %20 = vector.broadcast %14 : vector<1x256xi1> to vector<128x256xi1>
    %21 = arith.andi %19, %20 : vector<128x256xi1>
    %cst_17 = arith.constant 2.000000e+00 : f32
    %22 = vector.broadcast %cst_17 : f32 to vector<128x256xf32>
    %23 = arith.subf %11, %22 : vector<128x256xf32>
    %24 = math.exp %23 : vector<128x256xf32>
    %cst_18 = arith.constant 0.000000e+00 : f32
    %25 = vector.shape_cast %14 : vector<1x256xi1> to vector<1x256xi1>
    %26 = vector.broadcast %25 : vector<1x256xi1> to vector<128x256xi1>
    %27 = vector.broadcast %cst_18 : f32 to vector<128x256xf32>
    %28 = arith.select %26, %24, %27 : vector<128x256xi1>, vector<128x256xf32>
    %c0_19 = arith.constant 0 : index
    %c0_20 = arith.constant 0 : index
    %29 = vector.load %arg9[%c0_19, %c0_20] : memref<128x1xf32, #tpu.memory_space<vmem>>, vector<128x1xf32>
    %cst_21 = arith.constant dense<0.000000e+00> : vector<128xf32>
    %30 = vector.multi_reduction <add>, %28, %cst_21 [1] : vector<128x256xf32> to vector<128xf32>
    %31 = vector.shape_cast %30 : vector<128xf32> to vector<128x1xf32>
    %32 = arith.addf %29, %31 : vector<128x1xf32>
    %c0_22 = arith.constant 0 : index
    %c0_23 = arith.constant 0 : index
    %33 = vector.load %arg9[%c0_22, %c0_23] : memref<128x1xf32, #tpu.memory_space<vmem>>, vector<128x1xf32>
    tpu.vector_store %arg9[%c0_22, %c0_23], %32 {strides = array<i32>} : memref<128x1xf32, #tpu.memory_space<vmem>>, vector<128x1xf32>,
    %c0_24 = arith.constant 0 : index
    %c0_25 = arith.constant 0 : index
    %34 = vector.load %arg10[%c0_24, %c0_25] : memref<128x1xf32, #tpu.memory_space<vmem>>, vector<128x1xf32>
    %cst_26 = arith.constant 0.000000e+00 : f32
    %35 = vector.broadcast %cst_26 : f32 to vector<128x256xf32>
    %36 = arith.select %21, %11, %35 : vector<128x256xi1>, vector<128x256xf32>
    %cst_27 = arith.constant dense<0.000000e+00> : vector<128xf32>
    %37 = vector.multi_reduction <add>, %36, %cst_27 [1] : vector<128x256xf32> to vector<128xf32>
    %38 = vector.shape_cast %37 : vector<128xf32> to vector<128x1xf32>
    %39 = arith.addf %34, %38 : vector<128x1xf32>
    %c0_28 = arith.constant 0 : index
    %c0_29 = arith.constant 0 : index
    %40 = vector.load %arg10[%c0_28, %c0_29] : memref<128x1xf32, #tpu.memory_space<vmem>>, vector<128x1xf32>
    tpu.vector_store %arg10[%c0_28, %c0_29], %39 {strides = array<i32>} : memref<128x1xf32, #tpu.memory_space<vmem>>, vector<128x1xf32>,
    return
  }
  func.func @transform_0(%arg0: i32, %arg1: i32) -> (i32, i32) {
    %c0_i32 = arith.constant 0 : i32
    %c0_i32_0 = arith.constant 0 : i32
    return %arg0, %c0_i32 : i32, i32
  }
  func.func @transform_1(%arg0: i32, %arg1: i32) -> (i32, i32) {
    %c0_i32 = arith.constant 0 : i32
    %c0_i32_0 = arith.constant 0 : i32
    return %arg0, %c0_i32 : i32, i32
  }
  func.func @transform_2(%arg0: i32, %arg1: i32) -> (i32, i32) {
    %c0_i32 = arith.constant 0 : i32
    %c0_i32_0 = arith.constant 0 : i32
    return %arg1, %c0_i32 : i32, i32
  }
  func.func @transform_3(%arg0: i32, %arg1: i32) -> (i32, i32) {
    %c0_i32 = arith.constant 0 : i32
    %c0_i32_0 = arith.constant 0 : i32
    return %arg1, %c0_i32 : i32, i32
  }
  func.func @transform_4(%arg0: i32, %arg1: i32) -> (i32, i32) {
    %c0_i32 = arith.constant 0 : i32
    %c0_i32_0 = arith.constant 0 : i32
    return %arg0, %c0_i32 : i32, i32
  }
  func.func @transform_5(%arg0: i32, %arg1: i32) -> (i32, i32) {
    %c0_i32 = arith.constant 0 : i32
    %c0_i32_0 = arith.constant 0 : i32
    return %c0_i32, %arg1 : i32, i32
  }
  func.func @transform_6(%arg0: i32, %arg1: i32) -> (i32, i32) {
    %c0_i32 = arith.constant 0 : i32
    %c0_i32_0 = arith.constant 0 : i32
    return %c0_i32, %arg1 : i32, i32
  }
  func.func @transform_7(%arg0: i32, %arg1: i32) -> (i32, i32) {
    %c0_i32 = arith.constant 0 : i32
    %c0_i32_0 = arith.constant 0 : i32
    return %arg0, %c0_i32 : i32, i32
  }
  func.func @transform_8(%arg0: i32, %arg1: i32) -> (i32, i32) {
    %c0_i32 = arith.constant 0 : i32
    %c0_i32_0 = arith.constant 0 : i32
    return %arg0, %c0_i32 : i32, i32
  }
}

</mosaic_0001>

<llo_original>
// kernel: tpu_custom_call.1
$region0: #{tpu_custom_call.1}
  #allocation0 [shape = 'u32[]', space=smem, size = 0x4, offset = 0x4, fixed_abs, tag = 'smem constant byte address 0x4 - core index']
  #allocation1 [shape = 'u32[72,128]{1,0:T(1,128)}', space=vmem, size = 0x9000, scoped, tag = 'internal scratch']
  %s0 = inlined_call_operand.vmem [shape: bf16[256,128], index: 0, kind: input, shape index: {}]
  %s1 = inlined_call_operand.vmem [shape: bf16[256,128], index: 1, kind: input, shape index: {}]
  %s2 = inlined_call_operand.hbm [shape: bf16[256,128], index: 2, kind: input, shape index: {}]
  %s3 = inlined_call_operand.hbm [shape: bf16[256,128], index: 3, kind: input, shape index: {}]
  %s4 = inlined_call_operand.vmem [shape: s32[256,1], index: 4, kind: input, shape index: {}]
  %s5 = inlined_call_operand.vmem [shape: s32[1,256], index: 5, kind: input, shape index: {}]
  %s6 = inlined_call_operand.vmem [shape: s32[1,256], index: 6, kind: input, shape index: {}]
  %s7 = inlined_call_operand.vmem [shape: f32[256,1], index: 7, kind: output, shape index: {0}]
  %s8 = inlined_call_operand.vmem [shape: f32[256,1], index: 8, kind: output, shape index: {1}]
  %9 = xla_tuple %s7, %s8
  %s10 = sld [smem:[#allocation0]]
  $region81: #{tpu_custom_call.1} parent=0
    _
  %s12 = ssub.s32 1, %s10
  %s13 = scalar_select 0, %s12, %s10
  $region1: #{tpu_custom_call.1} parent=0
    #allocation2 [shape = 'u8[65536]{0}', space=vmem, size = 0x10000, scoped, tag = 'input window, operand 2, single buffered']
    #allocation3 [shape = 's32[2]{0}', space=sflag, size = 0x8, scoped, tag = 'scoped memory for tpu_custom_call.1']
    #allocation4 [shape = 'u8[65536]{0}', space=vmem, size = 0x10000, scoped, tag = 'input window, operand 3, single buffered']
    #allocation5 [shape = 's32[1]{0}', space=sflag, size = 0x4, scoped, tag = 'scoped memory for tpu_custom_call.1']
    %14 = vsyncpa [#allocation3], 0
    %15 = vsyncpa [#allocation5], 0
    loop: start=0, step=1, limit=4
    $region2: #{tpu_custom_call.1} parent=1 // loop_pre_header
      _
    $region3: #{tpu_custom_call.1} parent=1 // loop_header
      %s17 = sphi 0, %s21
      %p18 = scmp.ge.s32.totalorder %s17, 4
      %s24 = sphi 0, %s36
      %s25 = sphi 0, %s32
      %s26 = sphi 0, %s24
      %s27 = sphi 0, %s25
      %s28 = sphi 0, %s26
      %s29 = sphi 0, %s27
      %s39 = sphi 0, %s41
      %s42 = sphi 0, %s39
      %s43 = sphi 0, %s42
      %s59 = sphi 0, %s43
      %s65 = sphi 0, %s67
      %s68 = sphi 0, %s65
      %s69 = sphi 0, %s68
      %s85 = sphi 0, %s69
      %s91 = sphi 0, %s93
      %s94 = sphi 0, %s91
      %s95 = sphi 0, %s94
      %s111 = sphi 0, %s95
      %s117 = sphi 0, %s119
      %s120 = sphi 0, %s117
      %s121 = sphi 0, %s120
      %s137 = sphi 0, %s121
      %s143 = sphi 0, %s145
      %s146 = sphi 0, %s143
      %s147 = sphi 0, %s146
      %s163 = sphi 0, %s147
      %s169 = sphi 0, %s171
      %s172 = sphi 0, %s169
      %s173 = sphi 0, %s172
      %s189 = sphi 0, %s173
      %s195 = sphi 0, %s197
      %s198 = sphi 0, %s195
      %s199 = sphi 0, %s198
      %s215 = sphi 0, %s199
      %s221 = sphi 0, %s223
      %s224 = sphi 0, %s221
      %s225 = sphi 0, %s224
      %s241 = sphi 0, %s225
      %s247 = sphi 0, %s249
      %s250 = sphi 0, %s247
      %s251 = sphi 0, %s250
      %s267 = sphi 0, %s251
    $region4: #{tpu_custom_call.1} parent=1 // loop_header_branch
      %20 = sbr.rel (%p18) target = $region8
    $region5: #{tpu_custom_call.1} parent=1 // loop_body
      %s22 = ssub.s32 %s17, 1
      %s23 = ssub.s32 %s17, 2
      %s30 = sadd.s32 1, %s25
      %p31 = scmp.ge.s32.totalorder %s30, 1
      %s32 = scalar_select %p31, 0, %s30
      %s33 = sadd.s32 1, %s24
      %s34 = scalar_select %p31, %s33, %s24
      %p35 = scmp.ge.s32.totalorder %s34, 2
      %s36 = scalar_select %p35, 0, %s34
      %s37 = ssub.s32 %s24, %s36
      %p38 = scmp.eq.s32.totalorder %s37, 0
      %s40 = sadd.s32 %s39, 1
      %s41 = scalar_select %p38, %s39, %s40
      %p44 = pneg %p38
      %p45 = scmp.eq.s32.totalorder %s17, 1
      %p46 = por %p44, %p45
      %p47 = scmp.ne.s32.totalorder %s39, %s42
      %p48 = scmp.eq.s32.totalorder %s17, 0
      %p49 = por %p47, %p48
      %p50 = scmp.ne.s32.totalorder %s39, %s42
      %p51 = scmp.eq.s32.totalorder %s22, 1
      %p52 = por %p50, %p51
      %p53 = scmp.ne.s32.totalorder %s42, %s43
      %p54 = scmp.eq.s32.totalorder %s22, 0
      %p55 = por %p53, %p54
      %p56 = scmp.ne.s32.totalorder %s42, %s43
      %p57 = scmp.eq.s32.totalorder %s23, 1
      %p58 = por %p56, %p57
      %p60 = scmp.ne.s32.totalorder %s43, %s59
      %p61 = scmp.eq.s32.totalorder %s23, 0
      %p62 = por %p60, %p61
      %s63 = ssub.s32 %s24, %s36
      %p64 = scmp.eq.s32.totalorder %s63, 0
      %s66 = sadd.s32 %s65, 1
      %s67 = scalar_select %p64, %s65, %s66
      %p70 = pneg %p64
      %p71 = scmp.eq.s32.totalorder %s17, 1
      %p72 = por %p70, %p71
      %p73 = scmp.ne.s32.totalorder %s65, %s68
      %p74 = scmp.eq.s32.totalorder %s17, 0
      %p75 = por %p73, %p74
      %p76 = scmp.ne.s32.totalorder %s65, %s68
      %p77 = scmp.eq.s32.totalorder %s22, 1
      %p78 = por %p76, %p77
      %p79 = scmp.ne.s32.totalorder %s68, %s69
      %p80 = scmp.eq.s32.totalorder %s22, 0
      %p81 = por %p79, %p80
      %p82 = scmp.ne.s32.totalorder %s68, %s69
      %p83 = scmp.eq.s32.totalorder %s23, 1
      %p84 = por %p82, %p83
      %p86 = scmp.ne.s32.totalorder %s69, %s85
      %p87 = scmp.eq.s32.totalorder %s23, 0
      %p88 = por %p86, %p87
      %s89 = ssub.s32 %s25, %s32
      %p90 = scmp.eq.s32.totalorder %s89, 0
      %s92 = sadd.s32 %s91, 1
      %s93 = scalar_select %p90, %s91, %s92
      %p96 = pneg %p90
      %p97 = scmp.eq.s32.totalorder %s17, 1
      %p98 = por %p96, %p97
      %p99 = scmp.ne.s32.totalorder %s91, %s94
      %p100 = scmp.eq.s32.totalorder %s17, 0
      %p101 = por %p99, %p100
      %p102 = scmp.ne.s32.totalorder %s91, %s94
      %p103 = scmp.eq.s32.totalorder %s22, 1
      %p104 = por %p102, %p103
      %p105 = scmp.ne.s32.totalorder %s94, %s95
      %p106 = scmp.eq.s32.totalorder %s22, 0
      %p107 = por %p105, %p106
      %p108 = scmp.ne.s32.totalorder %s94, %s95
      %p109 = scmp.eq.s32.totalorder %s23, 1
      %p110 = por %p108, %p109
      %p112 = scmp.ne.s32.totalorder %s95, %s111
      %p113 = scmp.eq.s32.totalorder %s23, 0
      %p114 = por %p112, %p113
      %s115 = ssub.s32 %s25, %s32
      %p116 = scmp.eq.s32.totalorder %s115, 0
      %s118 = sadd.s32 %s117, 1
      %s119 = scalar_select %p116, %s117, %s118
      %p122 = pneg %p116
      %p123 = scmp.eq.s32.totalorder %s17, 1
      %p124 = por %p122, %p123
      %p125 = scmp.ne.s32.totalorder %s117, %s120
      %p126 = scmp.eq.s32.totalorder %s17, 0
      %p127 = por %p125, %p126
      %p128 = scmp.ne.s32.totalorder %s117, %s120
      %p129 = scmp.eq.s32.totalorder %s22, 1
      %p130 = por %p128, %p129
      %p131 = scmp.ne.s32.totalorder %s120, %s121
      %p132 = scmp.eq.s32.totalorder %s22, 0
      %p133 = por %p131, %p132
      %p134 = scmp.ne.s32.totalorder %s120, %s121
      %p135 = scmp.eq.s32.totalorder %s23, 1
      %p136 = por %p134, %p135
      %p138 = scmp.ne.s32.totalorder %s121, %s137
      %p139 = scmp.eq.s32.totalorder %s23, 0
      %p140 = por %p138, %p139
      %s141 = ssub.s32 %s24, %s36
      %p142 = scmp.eq.s32.totalorder %s141, 0
      %s144 = sadd.s32 %s143, 1
      %s145 = scalar_select %p142, %s143, %s144
      %p148 = pneg %p142
      %p149 = scmp.eq.s32.totalorder %s17, 1
      %p150 = por %p148, %p149
      %p151 = scmp.ne.s32.totalorder %s143, %s146
      %p152 = scmp.eq.s32.totalorder %s17, 0
      %p153 = por %p151, %p152
      %p154 = scmp.ne.s32.totalorder %s143, %s146
      %p155 = scmp.eq.s32.totalorder %s22, 1
      %p156 = por %p154, %p155
      %p157 = scmp.ne.s32.totalorder %s146, %s147
      %p158 = scmp.eq.s32.totalorder %s22, 0
      %p159 = por %p157, %p158
      %p160 = scmp.ne.s32.totalorder %s146, %s147
      %p161 = scmp.eq.s32.totalorder %s23, 1
      %p162 = por %p160, %p161
      %p164 = scmp.ne.s32.totalorder %s147, %s163
      %p165 = scmp.eq.s32.totalorder %s23, 0
      %p166 = por %p164, %p165
      %s167 = ssub.s32 %s25, %s32
      %p168 = scmp.eq.s32.totalorder %s167, 0
      %s170 = sadd.s32 %s169, 1
      %s171 = scalar_select %p168, %s169, %s170
      %p174 = pneg %p168
      %p175 = scmp.eq.s32.totalorder %s17, 1
      %p176 = por %p174, %p175
      %p177 = scmp.ne.s32.totalorder %s169, %s172
      %p178 = scmp.eq.s32.totalorder %s17, 0
      %p179 = por %p177, %p178
      %p180 = scmp.ne.s32.totalorder %s169, %s172
      %p181 = scmp.eq.s32.totalorder %s22, 1
      %p182 = por %p180, %p181
      %p183 = scmp.ne.s32.totalorder %s172, %s173
      %p184 = scmp.eq.s32.totalorder %s22, 0
      %p185 = por %p183, %p184
      %p186 = scmp.ne.s32.totalorder %s172, %s173
      %p187 = scmp.eq.s32.totalorder %s23, 1
      %p188 = por %p186, %p187
      %p190 = scmp.ne.s32.totalorder %s173, %s189
      %p191 = scmp.eq.s32.totalorder %s23, 0
      %p192 = por %p190, %p191
      %s193 = ssub.s32 %s25, %s32
      %p194 = scmp.eq.s32.totalorder %s193, 0
      %s196 = sadd.s32 %s195, 1
      %s197 = scalar_select %p194, %s195, %s196
      %p200 = pneg %p194
      %p201 = scmp.eq.s32.totalorder %s17, 1
      %p202 = por %p200, %p201
      %p203 = scmp.ne.s32.totalorder %s195, %s198
      %p204 = scmp.eq.s32.totalorder %s17, 0
      %p205 = por %p203, %p204
      %p206 = scmp.ne.s32.totalorder %s195, %s198
      %p207 = scmp.eq.s32.totalorder %s22, 1
      %p208 = por %p206, %p207
      %p209 = scmp.ne.s32.totalorder %s198, %s199
      %p210 = scmp.eq.s32.totalorder %s22, 0
      %p211 = por %p209, %p210
      %p212 = scmp.ne.s32.totalorder %s198, %s199
      %p213 = scmp.eq.s32.totalorder %s23, 1
      %p214 = por %p212, %p213
      %p216 = scmp.ne.s32.totalorder %s199, %s215
      %p217 = scmp.eq.s32.totalorder %s23, 0
      %p218 = por %p216, %p217
      %s219 = ssub.s32 %s24, %s36
      %p220 = scmp.eq.s32.totalorder %s219, 0
      %s222 = sadd.s32 %s221, 1
      %s223 = scalar_select %p220, %s221, %s222
      %p226 = pneg %p220
      %p227 = scmp.eq.s32.totalorder %s17, 1
      %p228 = por %p226, %p227
      %p229 = scmp.ne.s32.totalorder %s221, %s224
      %p230 = scmp.eq.s32.totalorder %s17, 0
      %p231 = por %p229, %p230
      %p232 = scmp.ne.s32.totalorder %s221, %s224
      %p233 = scmp.eq.s32.totalorder %s22, 1
      %p234 = por %p232, %p233
      %p235 = scmp.ne.s32.totalorder %s224, %s225
      %p236 = scmp.eq.s32.totalorder %s22, 0
      %p237 = por %p235, %p236
      %p238 = scmp.ne.s32.totalorder %s224, %s225
      %p239 = scmp.eq.s32.totalorder %s23, 1
      %p240 = por %p238, %p239
      %p242 = scmp.ne.s32.totalorder %s225, %s241
      %p243 = scmp.eq.s32.totalorder %s23, 0
      %p244 = por %p242, %p243
      %s245 = ssub.s32 %s24, %s36
      %p246 = scmp.eq.s32.totalorder %s245, 0
      %s248 = sadd.s32 %s247, 1
      %s249 = scalar_select %p246, %s247, %s248
      %p252 = pneg %p246
      %p253 = scmp.eq.s32.totalorder %s17, 1
      %p254 = por %p252, %p253
      %p255 = scmp.ne.s32.totalorder %s247, %s250
      %p256 = scmp.eq.s32.totalorder %s17, 0
      %p257 = por %p255, %p256
      %p258 = scmp.ne.s32.totalorder %s247, %s250
      %p259 = scmp.eq.s32.totalorder %s22, 1
      %p260 = por %p258, %p259
      %p261 = scmp.ne.s32.totalorder %s250, %s251
      %p262 = scmp.eq.s32.totalorder %s22, 0
      %p263 = por %p261, %p262
      %p264 = scmp.ne.s32.totalorder %s250, %s251
      %p265 = scmp.eq.s32.totalorder %s23, 1
      %p266 = por %p264, %p265
      %p268 = scmp.ne.s32.totalorder %s251, %s267
      %p269 = scmp.eq.s32.totalorder %s23, 0
      %p270 = por %p268, %p269
      %p271 = scmp.le.s32.totalorder 1, %s17
      %p272 = scmp.lt.s32.totalorder %s17, 3
      %p273 = pnand %p271, %p272
      %p274 = pneg %p273
      // Predicated region
      $region9: #{tpu_custom_call.1} parent=5 // pred_check
        _
      $region10: #{tpu_custom_call.1} parent=5 // pred_check_branch
        %276 = sbr.rel (%p273) target = $region12
      $region11: #{tpu_custom_call.1} parent=5 // pred_region
        %s277 = ssub.s32 %s17, 1
        // Predicated region
        $region13: #{tpu_custom_call.1} parent=11 // pred_check
          %p278 = pneg %p107
        $region14: #{tpu_custom_call.1} parent=11 // pred_check_branch
          %280 = sbr.rel (%p278) target = $region16
        $region15: #{tpu_custom_call.1} parent=11 // pred_region
          %s281 = smul.u32 32, %s27
          %283 = vsyncadd [#allocation3], 0
          %s284 = smul.addr %s281, 4
          %s285 = scalar_lea.hbm %s2, %s284
          %s286 = sshll.u32 %s285, 4
          %s287 = int_to_ptr.hbm [resolvable:$true] %s286
          %s288 = sshll.u32 [#allocation2], 4
          %s289 = int_to_ptr.vmem [resolvable:$true] %s288
          %294 = dma.hbm_to_vmem [thread:$0]  %s287, 2048, %s289, [#allocation3], 64, 64, 4
        $region16: #{tpu_custom_call.1} parent=11 // pred_fallthru
          _
        // Predicated region
        $region17: #{tpu_custom_call.1} parent=11 // pred_check
          %p295 = pneg %p133
        $region18: #{tpu_custom_call.1} parent=11 // pred_check_branch
          %297 = sbr.rel (%p295) target = $region20
        $region19: #{tpu_custom_call.1} parent=11 // pred_region
          %s298 = smul.u32 32, %s27
          %300 = vsyncadd [#allocation5], 0
          %s301 = smul.addr %s298, 4
          %s302 = scalar_lea.hbm %s3, %s301
          %s303 = sshll.u32 %s302, 4
          %s304 = int_to_ptr.hbm [resolvable:$true] %s303
          %s305 = sshll.u32 [#allocation4], 4
          %s306 = int_to_ptr.vmem [resolvable:$true] %s305
          %311 = dma.hbm_to_vmem [thread:$0]  %s304, 2048, %s306, [#allocation5], 64, 64, 4
        $region20: #{tpu_custom_call.1} parent=11 // pred_fallthru
          _
        // Predicated region
        $region21: #{tpu_custom_call.1} parent=11 // pred_check
          %p312 = pneg %p185
        $region22: #{tpu_custom_call.1} parent=11 // pred_check_branch
          %314 = sbr.rel (%p312) target = $region24
        $region23: #{tpu_custom_call.1} parent=11 // pred_region
          %s315 = smul.u32 2, %s27
          %p316 = scmp.lt.s32.totalorder %s315, 1
          %s317 = scalar_select %p316, %s315, 1
          %s318 = scalar_lea.vmem %s5, %s317
          %s319 = smul.u32 2, %s27
        $region24: #{tpu_custom_call.1} parent=11 // pred_fallthru
          _
        // Predicated region
        $region25: #{tpu_custom_call.1} parent=11 // pred_check
          %p320 = pneg %p211
        $region26: #{tpu_custom_call.1} parent=11 // pred_check_branch
          %322 = sbr.rel (%p320) target = $region28
        $region27: #{tpu_custom_call.1} parent=11 // pred_region
          %s323 = smul.u32 2, %s27
          %p324 = scmp.lt.s32.totalorder %s323, 1
          %s325 = scalar_select %p324, %s323, 1
          %s326 = scalar_lea.vmem %s6, %s325
          %s327 = smul.u32 2, %s27
        $region28: #{tpu_custom_call.1} parent=11 // pred_fallthru
          _
      $region12: #{tpu_custom_call.1} parent=5 // pred_fallthru
        _
      %p328 = scmp.lt.s32.totalorder %s17, 2
      // Predicated region
      $region29: #{tpu_custom_call.1} parent=5 // pred_check
        %p329 = pneg %p328
      $region30: #{tpu_custom_call.1} parent=5 // pred_check_branch
        %331 = sbr.rel (%p329) target = $region32
      $region31: #{tpu_custom_call.1} parent=5 // pred_region
        // Predicated region
        $region33: #{tpu_custom_call.1} parent=31 // pred_check
          %p332 = pneg %p49
        $region34: #{tpu_custom_call.1} parent=31 // pred_check_branch
          %334 = sbr.rel (%p332) target = $region36
        $region35: #{tpu_custom_call.1} parent=31 // pred_region
          %s335 = smul.u32 16, %s24
          %p336 = scmp.lt.s32.totalorder %s335, 31
          %s337 = scalar_select %p336, %s335, 31
          %s338 = smul.addr %s337, 4
          %s339 = scalar_lea.vmem %s0, %s338
          %s340 = smul.u32 16, %s24
        $region36: #{tpu_custom_call.1} parent=31 // pred_fallthru
          _
        // Predicated region
        $region37: #{tpu_custom_call.1} parent=31 // pred_check
          %p341 = pneg %p75
        $region38: #{tpu_custom_call.1} parent=31 // pred_check_branch
          %343 = sbr.rel (%p341) target = $region40
        $region39: #{tpu_custom_call.1} parent=31 // pred_region
          %s344 = smul.u32 16, %s24
          %p345 = scmp.lt.s32.totalorder %s344, 31
          %s346 = scalar_select %p345, %s344, 31
          %s347 = smul.addr %s346, 4
          %s348 = scalar_lea.vmem %s1, %s347
          %s349 = smul.u32 16, %s24
        $region40: #{tpu_custom_call.1} parent=31 // pred_fallthru
          _
        // Predicated region
        $region41: #{tpu_custom_call.1} parent=31 // pred_check
          %p350 = pneg %p153
        $region42: #{tpu_custom_call.1} parent=31 // pred_check_branch
          %352 = sbr.rel (%p350) target = $region44
        $region43: #{tpu_custom_call.1} parent=31 // pred_region
          %s353 = smul.u32 16, %s24
          %p354 = scmp.lt.s32.totalorder %s353, 31
          %s355 = scalar_select %p354, %s353, 31
          %s356 = smul.addr %s355, 8
          %s357 = scalar_lea.vmem %s4, %s356
          %s358 = smul.u32 16, %s24
        $region44: #{tpu_custom_call.1} parent=31 // pred_fallthru
          _
      $region32: #{tpu_custom_call.1} parent=5 // pred_fallthru
        _
      %p359 = scmp.le.s32.totalorder 1, %s17
      %p360 = scmp.lt.s32.totalorder %s17, 3
      %p361 = pnand %p359, %p360
      %p362 = pneg %p361
      // Predicated region
      $region45: #{tpu_custom_call.1} parent=5 // pred_check
        _
      $region46: #{tpu_custom_call.1} parent=5 // pred_check_branch
        %364 = sbr.rel (%p361) target = $region48
      $region47: #{tpu_custom_call.1} parent=5 // pred_region
        %s365 = ssub.s32 %s17, 1
        // Predicated region
        $region49: #{tpu_custom_call.1} parent=47 // pred_check
          %p366 = pneg %p107
        $region50: #{tpu_custom_call.1} parent=47 // pred_check_branch
          %368 = sbr.rel (%p366) target = $region52
        $region51: #{tpu_custom_call.1} parent=47 // pred_region
          %370 = dma.done [#allocation3], 2048
        $region52: #{tpu_custom_call.1} parent=47 // pred_fallthru
          _
        // Predicated region
        $region53: #{tpu_custom_call.1} parent=47 // pred_check
          %p371 = pneg %p133
        $region54: #{tpu_custom_call.1} parent=47 // pred_check_branch
          %373 = sbr.rel (%p371) target = $region56
        $region55: #{tpu_custom_call.1} parent=47 // pred_region
          %375 = dma.done [#allocation5], 2048
        $region56: #{tpu_custom_call.1} parent=47 // pred_fallthru
          _
        %s376 = smul.u32 16, %s26
        %p377 = scmp.lt.s32.totalorder %s376, 31
        %s378 = scalar_select %p377, %s376, 31
        %s379 = smul.addr %s378, 4
        %s380 = scalar_lea.vmem %s0, %s379
        %p381 = pneg %p55
        %p382 = pneg %p52
        %s383 = smul.u32 16, %s26
        %p384 = scmp.lt.s32.totalorder %s383, 31
        %s385 = scalar_select %p384, %s383, 31
        %s386 = smul.addr %s385, 4
        %s387 = scalar_lea.vmem %s1, %s386
        %p388 = pneg %p81
        %p389 = pneg %p78
        %p390 = pneg %p107
        %p391 = pneg %p104
        %p392 = pneg %p133
        %p393 = pneg %p130
        %s394 = smul.u32 16, %s26
        %p395 = scmp.lt.s32.totalorder %s394, 31
        %s396 = scalar_select %p395, %s394, 31
        %s397 = smul.addr %s396, 8
        %s398 = scalar_lea.vmem %s4, %s397
        %p399 = pneg %p159
        %p400 = pneg %p156
        %s401 = smul.u32 2, %s27
        %p402 = scmp.lt.s32.totalorder %s401, 1
        %s403 = scalar_select %p402, %s401, 1
        %s404 = scalar_lea.vmem %s5, %s403
        %p405 = pneg %p185
        %p406 = pneg %p182
        %s407 = smul.u32 2, %s27
        %p408 = scmp.lt.s32.totalorder %s407, 1
        %s409 = scalar_select %p408, %s407, 1
        %s410 = scalar_lea.vmem %s6, %s409
        %p411 = pneg %p211
        %p412 = pneg %p208
        %p413 = pneg %p237
        %p414 = pneg %p234
        %s415 = smul.u32 16, %s26
        %p416 = scmp.lt.s32.totalorder %s415, 31
        %s417 = scalar_select %p416, %s415, 31
        %s418 = smul.addr %s417, 8
        %s419 = scalar_lea.vmem %s7, %s418
        %p420 = pneg %p263
        %p421 = pneg %p260
        %s422 = smul.u32 16, %s26
        %p423 = scmp.lt.s32.totalorder %s422, 31
        %s424 = scalar_select %p423, %s422, 31
        %s425 = smul.addr %s424, 8
        %s426 = scalar_lea.vmem %s8, %s425
        %s427 = smul.u32 16, %s26
        %p428 = scmp.lt.s32.totalorder %s427, 31
        %s429 = scalar_select %p428, %s427, 31
        %s430 = smul.addr %s429, 4
        %s431 = scalar_lea.vmem %s0, %s430
        %s432 = smul.u32 16, %s26
        %s433 = smul.u32 16, %s26
        %p434 = scmp.lt.s32.totalorder %s433, 31
        %s435 = scalar_select %p434, %s433, 31
        %s436 = smul.addr %s435, 4
        %s437 = scalar_lea.vmem %s1, %s436
        %s438 = smul.u32 16, %s26
        %s439 = smul.u32 32, %s27
        %s440 = smul.u32 32, %s27
        %s441 = smul.u32 16, %s26
        %p442 = scmp.lt.s32.totalorder %s441, 31
        %s443 = scalar_select %p442, %s441, 31
        %s444 = smul.addr %s443, 8
        %s445 = scalar_lea.vmem %s4, %s444
        %s446 = smul.u32 16, %s26
        %s447 = smul.u32 2, %s27
        %p448 = scmp.lt.s32.totalorder %s447, 1
        %s449 = scalar_select %p448, %s447, 1
        %s450 = scalar_lea.vmem %s5, %s449
        %s451 = smul.u32 2, %s27
        %s452 = smul.u32 2, %s27
        %p453 = scmp.lt.s32.totalorder %s452, 1
        %s454 = scalar_select %p453, %s452, 1
        %s455 = scalar_lea.vmem %s6, %s454
        %s456 = smul.u32 2, %s27
        %s457 = smul.u32 16, %s26
        %p458 = scmp.lt.s32.totalorder %s457, 31
        %s459 = scalar_select %p458, %s457, 31
        %s460 = smul.addr %s459, 8
        %s461 = scalar_lea.vmem %s7, %s460
        %s462 = smul.u32 16, %s26
        %s463 = smul.u32 16, %s26
        %p464 = scmp.lt.s32.totalorder %s463, 31
        %s465 = scalar_select %p464, %s463, 31
        %s466 = smul.addr %s465, 8
        %s467 = scalar_lea.vmem %s8, %s466
        %s468 = smul.u32 16, %s26
        %p469 = scmp.eq.s32.totalorder %s27, 0
        // Predicated region
        $region57: #{tpu_custom_call.1} parent=47 // pred_check
          %p470 = pneg %p469
        $region58: #{tpu_custom_call.1} parent=47 // pred_check_branch
          %472 = sbr.rel (%p470) target = $region60
        $region59: #{tpu_custom_call.1} parent=47 // pred_region
          %vm473 = vcmask 7168
          %474 = vst.msk [vmem:[%s461] sm:$0xff] %vm473, 0.0
          %475 = vst.msk [vmem:[%s461 + $0x8] sm:$0xff] %vm473, 0.0
          %476 = vst.msk [vmem:[%s461 + $0x10] sm:$0xff] %vm473, 0.0
          %477 = vst.msk [vmem:[%s461 + $0x18] sm:$0xff] %vm473, 0.0
          %478 = vst.msk [vmem:[%s461 + $0x20] sm:$0xff] %vm473, 0.0
          %479 = vst.msk [vmem:[%s461 + $0x28] sm:$0xff] %vm473, 0.0
          %480 = vst.msk [vmem:[%s461 + $0x30] sm:$0xff] %vm473, 0.0
          %481 = vst.msk [vmem:[%s461 + $0x38] sm:$0xff] %vm473, 0.0
          %482 = vst.msk [vmem:[%s461 + $0x40] sm:$0xff] %vm473, 0.0
          %483 = vst.msk [vmem:[%s461 + $0x48] sm:$0xff] %vm473, 0.0
          %484 = vst.msk [vmem:[%s461 + $0x50] sm:$0xff] %vm473, 0.0
          %485 = vst.msk [vmem:[%s461 + $0x58] sm:$0xff] %vm473, 0.0
          %486 = vst.msk [vmem:[%s461 + $0x60] sm:$0xff] %vm473, 0.0
          %487 = vst.msk [vmem:[%s461 + $0x68] sm:$0xff] %vm473, 0.0
          %488 = vst.msk [vmem:[%s461 + $0x70] sm:$0xff] %vm473, 0.0
          %489 = vst.msk [vmem:[%s461 + $0x78] sm:$0xff] %vm473, 0.0
          %490 = vst.msk [vmem:[%s467] sm:$0xff] %vm473, 0.0
          %491 = vst.msk [vmem:[%s467 + $0x8] sm:$0xff] %vm473, 0.0
          %492 = vst.msk [vmem:[%s467 + $0x10] sm:$0xff] %vm473, 0.0
          %493 = vst.msk [vmem:[%s467 + $0x18] sm:$0xff] %vm473, 0.0
          %494 = vst.msk [vmem:[%s467 + $0x20] sm:$0xff] %vm473, 0.0
          %495 = vst.msk [vmem:[%s467 + $0x28] sm:$0xff] %vm473, 0.0
          %496 = vst.msk [vmem:[%s467 + $0x30] sm:$0xff] %vm473, 0.0
          %497 = vst.msk [vmem:[%s467 + $0x38] sm:$0xff] %vm473, 0.0
          %498 = vst.msk [vmem:[%s467 + $0x40] sm:$0xff] %vm473, 0.0
          %499 = vst.msk [vmem:[%s467 + $0x48] sm:$0xff] %vm473, 0.0
          %500 = vst.msk [vmem:[%s467 + $0x50] sm:$0xff] %vm473, 0.0
          %501 = vst.msk [vmem:[%s467 + $0x58] sm:$0xff] %vm473, 0.0
          %502 = vst.msk [vmem:[%s467 + $0x60] sm:$0xff] %vm473, 0.0
          %503 = vst.msk [vmem:[%s467 + $0x68] sm:$0xff] %vm473, 0.0
          %504 = vst.msk [vmem:[%s467 + $0x70] sm:$0xff] %vm473, 0.0
          %505 = vst.msk [vmem:[%s467 + $0x78] sm:$0xff] %vm473, 0.0
        $region60: #{tpu_custom_call.1} parent=47 // pred_fallthru
          _
        %v506 = vld [vmem:[%s431] sm:$0xf]
        %v507 = vld [vmem:[%s431 + $0x4] sm:$0xf]
        %v508 = vld [vmem:[%s431 + $0x8] sm:$0xf]
        %v509 = vld [vmem:[%s431 + $0xc] sm:$0xf]
        %v510 = vld [vmem:[%s431 + $0x10] sm:$0xf]
        %v511 = vld [vmem:[%s431 + $0x14] sm:$0xf]
        %v512 = vld [vmem:[%s431 + $0x18] sm:$0xf]
        %v513 = vld [vmem:[%s431 + $0x1c] sm:$0xf]
        %v514 = vld [vmem:[%s431 + $0x20] sm:$0xf]
        %v515 = vld [vmem:[%s431 + $0x24] sm:$0xf]
        %v516 = vld [vmem:[%s431 + $0x28] sm:$0xf]
        %v517 = vld [vmem:[%s431 + $0x2c] sm:$0xf]
        %v518 = vld [vmem:[%s431 + $0x30] sm:$0xf]
        %v519 = vld [vmem:[%s431 + $0x34] sm:$0xf]
        %v520 = vld [vmem:[%s431 + $0x38] sm:$0xf]
        %v521 = vld [vmem:[%s431 + $0x3c] sm:$0xf]
        %v522 = vld [vmem:[%s437] sm:$0xf]
        %v523 = vld [vmem:[%s437 + $0x4] sm:$0xf]
        %v524 = vld [vmem:[%s437 + $0x8] sm:$0xf]
        %v525 = vld [vmem:[%s437 + $0xc] sm:$0xf]
        %v526 = vld [vmem:[%s437 + $0x10] sm:$0xf]
        %v527 = vld [vmem:[%s437 + $0x14] sm:$0xf]
        %v528 = vld [vmem:[%s437 + $0x18] sm:$0xf]
        %v529 = vld [vmem:[%s437 + $0x1c] sm:$0xf]
        %v530 = vld [vmem:[%s437 + $0x20] sm:$0xf]
        %v531 = vld [vmem:[%s437 + $0x24] sm:$0xf]
        %v532 = vld [vmem:[%s437 + $0x28] sm:$0xf]
        %v533 = vld [vmem:[%s437 + $0x2c] sm:$0xf]
        %v534 = vld [vmem:[%s437 + $0x30] sm:$0xf]
        %v535 = vld [vmem:[%s437 + $0x34] sm:$0xf]
        %v536 = vld [vmem:[%s437 + $0x38] sm:$0xf]
        %v537 = vld [vmem:[%s437 + $0x3c] sm:$0xf]
        %v538 = vld [vmem:[#allocation2] sm:$0xf]
        %v539 = vld [vmem:[#allocation2 + $0x4] sm:$0xf]
        %v540 = vld [vmem:[#allocation2 + $0x8] sm:$0xf]
        %v541 = vld [vmem:[#allocation2 + $0xc] sm:$0xf]
        %v542 = vld [vmem:[#allocation2 + $0x10] sm:$0xf]
        %v543 = vld [vmem:[#allocation2 + $0x14] sm:$0xf]
        %v544 = vld [vmem:[#allocation2 + $0x18] sm:$0xf]
        %v545 = vld [vmem:[#allocation2 + $0x1c] sm:$0xf]
        %v546 = vld [vmem:[#allocation2 + $0x20] sm:$0xf]
        %v547 = vld [vmem:[#allocation2 + $0x24] sm:$0xf]
        %v548 = vld [vmem:[#allocation2 + $0x28] sm:$0xf]
        %v549 = vld [vmem:[#allocation2 + $0x2c] sm:$0xf]
        %v550 = vld [vmem:[#allocation2 + $0x30] sm:$0xf]
        %v551 = vld [vmem:[#allocation2 + $0x34] sm:$0xf]
        %v552 = vld [vmem:[#allocation2 + $0x38] sm:$0xf]
        %v553 = vld [vmem:[#allocation2 + $0x3c] sm:$0xf]
        %v554 = vld [vmem:[#allocation2 + $0x40] sm:$0xf]
        %v555 = vld [vmem:[#allocation2 + $0x44] sm:$0xf]
        %v556 = vld [vmem:[#allocation2 + $0x48] sm:$0xf]
        %v557 = vld [vmem:[#allocation2 + $0x4c] sm:$0xf]
        %v558 = vld [vmem:[#allocation2 + $0x50] sm:$0xf]
        %v559 = vld [vmem:[#allocation2 + $0x54] sm:$0xf]
        %v560 = vld [vmem:[#allocation2 + $0x58] sm:$0xf]
        %v561 = vld [vmem:[#allocation2 + $0x5c] sm:$0xf]
        %v562 = vld [vmem:[#allocation2 + $0x60] sm:$0xf]
        %v563 = vld [vmem:[#allocation2 + $0x64] sm:$0xf]
        %v564 = vld [vmem:[#allocation2 + $0x68] sm:$0xf]
        %v565 = vld [vmem:[#allocation2 + $0x6c] sm:$0xf]
        %v566 = vld [vmem:[#allocation2 + $0x70] sm:$0xf]
        %v567 = vld [vmem:[#allocation2 + $0x74] sm:$0xf]
        %v568 = vld [vmem:[#allocation2 + $0x78] sm:$0xf]
        %v569 = vld [vmem:[#allocation2 + $0x7c] sm:$0xf]
        %v570 = vld [vmem:[#allocation4] sm:$0xf]
        %v571 = vld [vmem:[#allocation4 + $0x4] sm:$0xf]
        %v572 = vld [vmem:[#allocation4 + $0x8] sm:$0xf]
        %v573 = vld [vmem:[#allocation4 + $0xc] sm:$0xf]
        %v574 = vld [vmem:[#allocation4 + $0x10] sm:$0xf]
        %v575 = vld [vmem:[#allocation4 + $0x14] sm:$0xf]
        %v576 = vld [vmem:[#allocation4 + $0x18] sm:$0xf]
        %v577 = vld [vmem:[#allocation4 + $0x1c] sm:$0xf]
        %v578 = vld [vmem:[#allocation4 + $0x20] sm:$0xf]
        %v579 = vld [vmem:[#allocation4 + $0x24] sm:$0xf]
        %v580 = vld [vmem:[#allocation4 + $0x28] sm:$0xf]
        %v581 = vld [vmem:[#allocation4 + $0x2c] sm:$0xf]
        %v582 = vld [vmem:[#allocation4 + $0x30] sm:$0xf]
        %v583 = vld [vmem:[#allocation4 + $0x34] sm:$0xf]
        %v584 = vld [vmem:[#allocation4 + $0x38] sm:$0xf]
        %v585 = vld [vmem:[#allocation4 + $0x3c] sm:$0xf]
        %v586 = vld [vmem:[#allocation4 + $0x40] sm:$0xf]
        %v587 = vld [vmem:[#allocation4 + $0x44] sm:$0xf]
        %v588 = vld [vmem:[#allocation4 + $0x48] sm:$0xf]
        %v589 = vld [vmem:[#allocation4 + $0x4c] sm:$0xf]
        %v590 = vld [vmem:[#allocation4 + $0x50] sm:$0xf]
        %v591 = vld [vmem:[#allocation4 + $0x54] sm:$0xf]
        %v592 = vld [vmem:[#allocation4 + $0x58] sm:$0xf]
        %v593 = vld [vmem:[#allocation4 + $0x5c] sm:$0xf]
        %v594 = vld [vmem:[#allocation4 + $0x60] sm:$0xf]
        %v595 = vld [vmem:[#allocation4 + $0x64] sm:$0xf]
        %v596 = vld [vmem:[#allocation4 + $0x68] sm:$0xf]
        %v597 = vld [vmem:[#allocation4 + $0x6c] sm:$0xf]
        %v598 = vld [vmem:[#allocation4 + $0x70] sm:$0xf]
        %v599 = vld [vmem:[#allocation4 + $0x74] sm:$0xf]
        %v600 = vld [vmem:[#allocation4 + $0x78] sm:$0xf]
        %v601 = vld [vmem:[#allocation4 + $0x7c] sm:$0xf]
        %v618 = vunpack.c.l.b16 %v506
        %v619 = vunpack.c.l.b16 %v507
        %v620 = vunpack.c.l.b16 %v508
        %v621 = vunpack.c.l.b16 %v509
        %v622 = vunpack.c.l.b16 %v510
        %v623 = vunpack.c.l.b16 %v511
        %v624 = vunpack.c.l.b16 %v512
        %v625 = vunpack.c.l.b16 %v513
        %v626 = vunpack.c.l.b16 %v514
        %v627 = vunpack.c.l.b16 %v515
        %v628 = vunpack.c.l.b16 %v516
        %v629 = vunpack.c.l.b16 %v517
        %v630 = vunpack.c.l.b16 %v518
        %v631 = vunpack.c.l.b16 %v519
        %v632 = vunpack.c.l.b16 %v520
        %v633 = vunpack.c.l.b16 %v521
        %v634 = vpack.c.b16 %v619, %v618
        %v635 = vpack.c.b16 %v621, %v620
        %v636 = vpack.c.b16 %v623, %v622
        %v637 = vpack.c.b16 %v625, %v624
        %v638 = vpack.c.b16 %v627, %v626
        %v639 = vpack.c.b16 %v629, %v628
        %v640 = vpack.c.b16 %v631, %v630
        %v641 = vpack.c.b16 %v633, %v632
        %v682 = vunpack.c.l.b16 %v570
        %v683 = vunpack.c.l.b16 %v571
        %v684 = vunpack.c.l.b16 %v572
        %v685 = vunpack.c.l.b16 %v573
        %v686 = vunpack.c.l.b16 %v574
        %v687 = vunpack.c.l.b16 %v575
        %v688 = vunpack.c.l.b16 %v576
        %v689 = vunpack.c.l.b16 %v577
        %v690 = vunpack.c.l.b16 %v578
        %v691 = vunpack.c.l.b16 %v579
        %v692 = vunpack.c.l.b16 %v580
        %v693 = vunpack.c.l.b16 %v581
        %v694 = vunpack.c.l.b16 %v582
        %v695 = vunpack.c.l.b16 %v583
        %v696 = vunpack.c.l.b16 %v584
        %v697 = vunpack.c.l.b16 %v585
        %v698 = vunpack.c.l.b16 %v586
        %v699 = vunpack.c.l.b16 %v587
        %v700 = vunpack.c.l.b16 %v588
        %v701 = vunpack.c.l.b16 %v589
        %v702 = vunpack.c.l.b16 %v590
        %v703 = vunpack.c.l.b16 %v591
        %v704 = vunpack.c.l.b16 %v592
        %v705 = vunpack.c.l.b16 %v593
        %v706 = vunpack.c.l.b16 %v594
        %v707 = vunpack.c.l.b16 %v595
        %v708 = vunpack.c.l.b16 %v596
        %v709 = vunpack.c.l.b16 %v597
        %v710 = vunpack.c.l.b16 %v598
        %v711 = vunpack.c.l.b16 %v599
        %v712 = vunpack.c.l.b16 %v600
        %v713 = vunpack.c.l.b16 %v601
        %v714 = vpack.c.b16 %v683, %v682
        %v715 = vpack.c.b16 %v685, %v684
        %v716 = vpack.c.b16 %v687, %v686
        %v717 = vpack.c.b16 %v689, %v688
        %v718 = vpack.c.b16 %v691, %v690
        %v719 = vpack.c.b16 %v693, %v692
        %v720 = vpack.c.b16 %v695, %v694
        %v721 = vpack.c.b16 %v697, %v696
        %v722 = vpack.c.b16 %v699, %v698
        %v723 = vpack.c.b16 %v701, %v700
        %v724 = vpack.c.b16 %v703, %v702
        %v725 = vpack.c.b16 %v705, %v704
        %v726 = vpack.c.b16 %v707, %v706
        %v727 = vpack.c.b16 %v709, %v708
        %v728 = vpack.c.b16 %v711, %v710
        %v729 = vpack.c.b16 %v713, %v712
        %746 = vmatpush.bf16.xpose.msra.mxu0 %v721
        %747 = vmatpush.bf16.xpose.msra.mxu0 %v720
        %748 = vmatpush.bf16.xpose.msra.mxu0 %v719
        %749 = vmatpush.bf16.xpose.msra.mxu0 %v718
        %750 = vmatpush.bf16.xpose.msra.mxu0 %v717
        %751 = vmatpush.bf16.xpose.msra.mxu0 %v716
        %752 = vmatpush.bf16.xpose.msra.mxu0 %v715
        %753 = vmatpush.bf16.xpose.msra.mxu0 %v714
        %754 = vmatmul.bf16.gmra.mxu0 %v634
        %v755 = vpop.f32.mrf.mxu0
        %v756 = vadd.f32 0.0, %v755
        %v757 = vpop.f32.mrf.mxu0
        %v758 = vadd.f32 0.0, %v757
        %759 = vmatmul.bf16.gmra.mxu0 %v635
        %v760 = vpop.f32.mrf.mxu0
        %v761 = vadd.f32 0.0, %v760
        %v762 = vpop.f32.mrf.mxu0
        %v763 = vadd.f32 0.0, %v762
        %764 = vmatmul.bf16.gmra.mxu0 %v636
        %v765 = vpop.f32.mrf.mxu0
        %v766 = vadd.f32 0.0, %v765
        %v767 = vpop.f32.mrf.mxu0
        %v768 = vadd.f32 0.0, %v767
        %769 = vmatmul.bf16.gmra.mxu0 %v637
        %v770 = vpop.f32.mrf.mxu0
        %v771 = vadd.f32 0.0, %v770
        %v772 = vpop.f32.mrf.mxu0
        %v773 = vadd.f32 0.0, %v772
        %774 = vmatmul.bf16.gmra.mxu0 %v638
        %v775 = vpop.f32.mrf.mxu0
        %v776 = vadd.f32 0.0, %v775
        %v777 = vpop.f32.mrf.mxu0
        %v778 = vadd.f32 0.0, %v777
        %779 = vmatmul.bf16.gmra.mxu0 %v639
        %v780 = vpop.f32.mrf.mxu0
        %v781 = vadd.f32 0.0, %v780
        %v782 = vpop.f32.mrf.mxu0
        %v783 = vadd.f32 0.0, %v782
        %784 = vmatmul.bf16.gmra.mxu0 %v640
        %v785 = vpop.f32.mrf.mxu0
        %v786 = vadd.f32 0.0, %v785
        %v787 = vpop.f32.mrf.mxu0
        %v788 = vadd.f32 0.0, %v787
        %789 = vmatmul.bf16.gmra.mxu0 %v641
        %v790 = vpop.f32.mrf.mxu0
        %v791 = vadd.f32 0.0, %v790
        %v792 = vpop.f32.mrf.mxu0
        %v793 = vadd.f32 0.0, %v792
        %794 = vdwg.mxu0
        %795 = vmatpush.bf16.xpose.msra.mxu0 %v729
        %796 = vmatpush.bf16.xpose.msra.mxu0 %v728
        %797 = vmatpush.bf16.xpose.msra.mxu0 %v727
        %798 = vmatpush.bf16.xpose.msra.mxu0 %v726
        %799 = vmatpush.bf16.xpose.msra.mxu0 %v725
        %800 = vmatpush.bf16.xpose.msra.mxu0 %v724
        %801 = vmatpush.bf16.xpose.msra.mxu0 %v723
        %802 = vmatpush.bf16.xpose.msra.mxu0 %v722
        %803 = vmatmul.bf16.gmra.mxu0 %v634
        %v804 = vpop.f32.mrf.mxu0
        %v805 = vadd.f32 0.0, %v804
        %v806 = vpop.f32.mrf.mxu0
        %v807 = vadd.f32 0.0, %v806
        %808 = vmatmul.bf16.gmra.mxu0 %v635
        %v809 = vpop.f32.mrf.mxu0
        %v810 = vadd.f32 0.0, %v809
        %v811 = vpop.f32.mrf.mxu0
        %v812 = vadd.f32 0.0, %v811
        %813 = vmatmul.bf16.gmra.mxu0 %v636
        %v814 = vpop.f32.mrf.mxu0
        %v815 = vadd.f32 0.0, %v814
        %v816 = vpop.f32.mrf.mxu0
        %v817 = vadd.f32 0.0, %v816
        %818 = vmatmul.bf16.gmra.mxu0 %v637
        %v819 = vpop.f32.mrf.mxu0
        %v820 = vadd.f32 0.0, %v819
        %v821 = vpop.f32.mrf.mxu0
        %v822 = vadd.f32 0.0, %v821
        %823 = vmatmul.bf16.gmra.mxu0 %v638
        %v824 = vpop.f32.mrf.mxu0
        %v825 = vadd.f32 0.0, %v824
        %v826 = vpop.f32.mrf.mxu0
        %v827 = vadd.f32 0.0, %v826
        %828 = vmatmul.bf16.gmra.mxu0 %v639
        %v829 = vpop.f32.mrf.mxu0
        %v830 = vadd.f32 0.0, %v829
        %v831 = vpop.f32.mrf.mxu0
        %v832 = vadd.f32 0.0, %v831
        %833 = vmatmul.bf16.gmra.mxu0 %v640
        %v834 = vpop.f32.mrf.mxu0
        %v835 = vadd.f32 0.0, %v834
        %v836 = vpop.f32.mrf.mxu0
        %v837 = vadd.f32 0.0, %v836
        %838 = vmatmul.bf16.gmra.mxu0 %v641
        %v839 = vpop.f32.mrf.mxu0
        %v840 = vadd.f32 0.0, %v839
        %v841 = vpop.f32.mrf.mxu0
        %v842 = vadd.f32 0.0, %v841
        %843 = vdwg.mxu0
        %v876 = vunpack.c.l.b16 %v538
        %v877 = vunpack.c.l.b16 %v539
        %v878 = vunpack.c.l.b16 %v540
        %v879 = vunpack.c.l.b16 %v541
        %v880 = vunpack.c.l.b16 %v542
        %v881 = vunpack.c.l.b16 %v543
        %v882 = vunpack.c.l.b16 %v544
        %v883 = vunpack.c.l.b16 %v545
        %v884 = vunpack.c.l.b16 %v546
        %v885 = vunpack.c.l.b16 %v547
        %v886 = vunpack.c.l.b16 %v548
        %v887 = vunpack.c.l.b16 %v549
        %v888 = vunpack.c.l.b16 %v550
        %v889 = vunpack.c.l.b16 %v551
        %v890 = vunpack.c.l.b16 %v552
        %v891 = vunpack.c.l.b16 %v553
        %v892 = vunpack.c.l.b16 %v554
        %v893 = vunpack.c.l.b16 %v555
        %v894 = vunpack.c.l.b16 %v556
        %v895 = vunpack.c.l.b16 %v557
        %v896 = vunpack.c.l.b16 %v558
        %v897 = vunpack.c.l.b16 %v559
        %v898 = vunpack.c.l.b16 %v560
        %v899 = vunpack.c.l.b16 %v561
        %v900 = vunpack.c.l.b16 %v562
        %v901 = vunpack.c.l.b16 %v563
        %v902 = vunpack.c.l.b16 %v564
        %v903 = vunpack.c.l.b16 %v565
        %v904 = vunpack.c.l.b16 %v566
        %v905 = vunpack.c.l.b16 %v567
        %v906 = vunpack.c.l.b16 %v568
        %v907 = vunpack.c.l.b16 %v569
        %v908 = vpack.c.b16 %v877, %v876
        %v909 = vpack.c.b16 %v879, %v878
        %v910 = vpack.c.b16 %v881, %v880
        %v911 = vpack.c.b16 %v883, %v882
        %v912 = vpack.c.b16 %v885, %v884
        %v913 = vpack.c.b16 %v887, %v886
        %v914 = vpack.c.b16 %v889, %v888
        %v915 = vpack.c.b16 %v891, %v890
        %v916 = vpack.c.b16 %v893, %v892
        %v917 = vpack.c.b16 %v895, %v894
        %v918 = vpack.c.b16 %v897, %v896
        %v919 = vpack.c.b16 %v899, %v898
        %v920 = vpack.c.b16 %v901, %v900
        %v921 = vpack.c.b16 %v903, %v902
        %v922 = vpack.c.b16 %v905, %v904
        %v923 = vpack.c.b16 %v907, %v906
        %940 = vmatpush.bf16.xpose.msra.mxu0 %v915
        %941 = vmatpush.bf16.xpose.msra.mxu0 %v914
        %942 = vmatpush.bf16.xpose.msra.mxu0 %v913
        %943 = vmatpush.bf16.xpose.msra.mxu0 %v912
        %944 = vmatpush.bf16.xpose.msra.mxu0 %v911
        %945 = vmatpush.bf16.xpose.msra.mxu0 %v910
        %946 = vmatpush.bf16.xpose.msra.mxu0 %v909
        %947 = vmatpush.bf16.xpose.msra.mxu0 %v908
        %948 = vmatmul.bf16.gmra.mxu0 %v634
        %v949 = vpop.f32.mrf.mxu0
        %v950 = vadd.f32 %v756, %v949
        %v951 = vpop.f32.mrf.mxu0
        %v952 = vadd.f32 %v758, %v951
        %953 = vmatmul.bf16.gmra.mxu0 %v635
        %v954 = vpop.f32.mrf.mxu0
        %v955 = vadd.f32 %v761, %v954
        %v956 = vpop.f32.mrf.mxu0
        %v957 = vadd.f32 %v763, %v956
        %958 = vmatmul.bf16.gmra.mxu0 %v636
        %v959 = vpop.f32.mrf.mxu0
        %v960 = vadd.f32 %v766, %v959
        %v961 = vpop.f32.mrf.mxu0
        %v962 = vadd.f32 %v768, %v961
        %963 = vmatmul.bf16.gmra.mxu0 %v637
        %v964 = vpop.f32.mrf.mxu0
        %v965 = vadd.f32 %v771, %v964
        %v966 = vpop.f32.mrf.mxu0
        %v967 = vadd.f32 %v773, %v966
        %968 = vmatmul.bf16.gmra.mxu0 %v638
        %v969 = vpop.f32.mrf.mxu0
        %v970 = vadd.f32 %v776, %v969
        %v971 = vpop.f32.mrf.mxu0
        %v972 = vadd.f32 %v778, %v971
        %973 = vmatmul.bf16.gmra.mxu0 %v639
        %v974 = vpop.f32.mrf.mxu0
        %v975 = vadd.f32 %v781, %v974
        %v976 = vpop.f32.mrf.mxu0
        %v977 = vadd.f32 %v783, %v976
        %978 = vmatmul.bf16.gmra.mxu0 %v640
        %v979 = vpop.f32.mrf.mxu0
        %v980 = vadd.f32 %v786, %v979
        %v981 = vpop.f32.mrf.mxu0
        %v982 = vadd.f32 %v788, %v981
        %983 = vmatmul.bf16.gmra.mxu0 %v641
        %v984 = vpop.f32.mrf.mxu0
        %v985 = vadd.f32 %v791, %v984
        %v986 = vpop.f32.mrf.mxu0
        %v987 = vadd.f32 %v793, %v986
        %988 = vdwg.mxu0
        %989 = vmatpush.bf16.xpose.msra.mxu0 %v923
        %990 = vmatpush.bf16.xpose.msra.mxu0 %v922
        %991 = vmatpush.bf16.xpose.msra.mxu0 %v921
        %992 = vmatpush.bf16.xpose.msra.mxu0 %v920
        %993 = vmatpush.bf16.xpose.msra.mxu0 %v919
        %994 = vmatpush.bf16.xpose.msra.mxu0 %v918
        %995 = vmatpush.bf16.xpose.msra.mxu0 %v917
        %996 = vmatpush.bf16.xpose.msra.mxu0 %v916
        %997 = vmatmul.bf16.gmra.mxu0 %v634
        %v998 = vpop.f32.mrf.mxu0
        %v999 = vadd.f32 %v805, %v998
        %v1000 = vpop.f32.mrf.mxu0
        %v1001 = vadd.f32 %v807, %v1000
        %1002 = vmatmul.bf16.gmra.mxu0 %v635
        %v1003 = vpop.f32.mrf.mxu0
        %v1004 = vadd.f32 %v810, %v1003
        %v1005 = vpop.f32.mrf.mxu0
        %v1006 = vadd.f32 %v812, %v1005
        %1007 = vmatmul.bf16.gmra.mxu0 %v636
        %v1008 = vpop.f32.mrf.mxu0
        %v1009 = vadd.f32 %v815, %v1008
        %v1010 = vpop.f32.mrf.mxu0
        %v1011 = vadd.f32 %v817, %v1010
        %1012 = vmatmul.bf16.gmra.mxu0 %v637
        %v1013 = vpop.f32.mrf.mxu0
        %v1014 = vadd.f32 %v820, %v1013
        %v1015 = vpop.f32.mrf.mxu0
        %v1016 = vadd.f32 %v822, %v1015
        %1017 = vmatmul.bf16.gmra.mxu0 %v638
        %v1018 = vpop.f32.mrf.mxu0
        %v1019 = vadd.f32 %v825, %v1018
        %v1020 = vpop.f32.mrf.mxu0
        %v1021 = vadd.f32 %v827, %v1020
        %1022 = vmatmul.bf16.gmra.mxu0 %v639
        %v1023 = vpop.f32.mrf.mxu0
        %v1024 = vadd.f32 %v830, %v1023
        %v1025 = vpop.f32.mrf.mxu0
        %v1026 = vadd.f32 %v832, %v1025
        %1027 = vmatmul.bf16.gmra.mxu0 %v640
        %v1028 = vpop.f32.mrf.mxu0
        %v1029 = vadd.f32 %v835, %v1028
        %v1030 = vpop.f32.mrf.mxu0
        %v1031 = vadd.f32 %v837, %v1030
        %1032 = vmatmul.bf16.gmra.mxu0 %v641
        %v1033 = vpop.f32.mrf.mxu0
        %v1034 = vadd.f32 %v840, %v1033
        %v1035 = vpop.f32.mrf.mxu0
        %v1036 = vadd.f32 %v842, %v1035
        %1037 = vdwg.mxu0
        %v1054 = vunpack.c.l.b16 %v522
        %v1055 = vunpack.c.l.b16 %v523
        %v1056 = vunpack.c.l.b16 %v524
        %v1057 = vunpack.c.l.b16 %v525
        %v1058 = vunpack.c.l.b16 %v526
        %v1059 = vunpack.c.l.b16 %v527
        %v1060 = vunpack.c.l.b16 %v528
        %v1061 = vunpack.c.l.b16 %v529
        %v1062 = vunpack.c.l.b16 %v530
        %v1063 = vunpack.c.l.b16 %v531
        %v1064 = vunpack.c.l.b16 %v532
        %v1065 = vunpack.c.l.b16 %v533
        %v1066 = vunpack.c.l.b16 %v534
        %v1067 = vunpack.c.l.b16 %v535
        %v1068 = vunpack.c.l.b16 %v536
        %v1069 = vunpack.c.l.b16 %v537
        %v1070 = vpack.c.b16 %v1055, %v1054
        %v1071 = vpack.c.b16 %v1057, %v1056
        %v1072 = vpack.c.b16 %v1059, %v1058
        %v1073 = vpack.c.b16 %v1061, %v1060
        %v1074 = vpack.c.b16 %v1063, %v1062
        %v1075 = vpack.c.b16 %v1065, %v1064
        %v1076 = vpack.c.b16 %v1067, %v1066
        %v1077 = vpack.c.b16 %v1069, %v1068
        %1086 = vmatpush.bf16.xpose.msra.mxu0 %v915
        %1087 = vmatpush.bf16.xpose.msra.mxu0 %v914
        %1088 = vmatpush.bf16.xpose.msra.mxu0 %v913
        %1089 = vmatpush.bf16.xpose.msra.mxu0 %v912
        %1090 = vmatpush.bf16.xpose.msra.mxu0 %v911
        %1091 = vmatpush.bf16.xpose.msra.mxu0 %v910
        %1092 = vmatpush.bf16.xpose.msra.mxu0 %v909
        %1093 = vmatpush.bf16.xpose.msra.mxu0 %v908
        %1094 = vmatmul.bf16.gmra.mxu0 %v1070
        %v1095 = vpop.f32.mrf.mxu0
        %v1096 = vadd.f32 0.0, %v1095
        %v1097 = vpop.f32.mrf.mxu0
        %v1098 = vadd.f32 0.0, %v1097
        %1099 = vmatmul.bf16.gmra.mxu0 %v1071
        %v1100 = vpop.f32.mrf.mxu0
        %v1101 = vadd.f32 0.0, %v1100
        %v1102 = vpop.f32.mrf.mxu0
        %v1103 = vadd.f32 0.0, %v1102
        %1104 = vmatmul.bf16.gmra.mxu0 %v1072
        %v1105 = vpop.f32.mrf.mxu0
        %v1106 = vadd.f32 0.0, %v1105
        %v1107 = vpop.f32.mrf.mxu0
        %v1108 = vadd.f32 0.0, %v1107
        %1109 = vmatmul.bf16.gmra.mxu0 %v1073
        %v1110 = vpop.f32.mrf.mxu0
        %v1111 = vadd.f32 0.0, %v1110
        %v1112 = vpop.f32.mrf.mxu0
        %v1113 = vadd.f32 0.0, %v1112
        %1114 = vmatmul.bf16.gmra.mxu0 %v1074
        %v1115 = vpop.f32.mrf.mxu0
        %v1116 = vadd.f32 0.0, %v1115
        %v1117 = vpop.f32.mrf.mxu0
        %v1118 = vadd.f32 0.0, %v1117
        %1119 = vmatmul.bf16.gmra.mxu0 %v1075
        %v1120 = vpop.f32.mrf.mxu0
        %v1121 = vadd.f32 0.0, %v1120
        %v1122 = vpop.f32.mrf.mxu0
        %v1123 = vadd.f32 0.0, %v1122
        %1124 = vmatmul.bf16.gmra.mxu0 %v1076
        %v1125 = vpop.f32.mrf.mxu0
        %v1126 = vadd.f32 0.0, %v1125
        %v1127 = vpop.f32.mrf.mxu0
        %v1128 = vadd.f32 0.0, %v1127
        %1129 = vmatmul.bf16.gmra.mxu0 %v1077
        %v1130 = vpop.f32.mrf.mxu0
        %v1131 = vadd.f32 0.0, %v1130
        %v1132 = vpop.f32.mrf.mxu0
        %v1133 = vadd.f32 0.0, %v1132
        %1134 = vdwg.mxu0
        %1135 = vmatpush.bf16.xpose.msra.mxu0 %v923
        %1136 = vmatpush.bf16.xpose.msra.mxu0 %v922
        %1137 = vmatpush.bf16.xpose.msra.mxu0 %v921
        %1138 = vmatpush.bf16.xpose.msra.mxu0 %v920
        %1139 = vmatpush.bf16.xpose.msra.mxu0 %v919
        %1140 = vmatpush.bf16.xpose.msra.mxu0 %v918
        %1141 = vmatpush.bf16.xpose.msra.mxu0 %v917
        %1142 = vmatpush.bf16.xpose.msra.mxu0 %v916
        %1143 = vmatmul.bf16.gmra.mxu0 %v1070
        %v1144 = vpop.f32.mrf.mxu0
        %v1145 = vadd.f32 0.0, %v1144
        %v1146 = vpop.f32.mrf.mxu0
        %v1147 = vadd.f32 0.0, %v1146
        %1148 = vmatmul.bf16.gmra.mxu0 %v1071
        %v1149 = vpop.f32.mrf.mxu0
        %v1150 = vadd.f32 0.0, %v1149
        %v1151 = vpop.f32.mrf.mxu0
        %v1152 = vadd.f32 0.0, %v1151
        %1153 = vmatmul.bf16.gmra.mxu0 %v1072
        %v1154 = vpop.f32.mrf.mxu0
        %v1155 = vadd.f32 0.0, %v1154
        %v1156 = vpop.f32.mrf.mxu0
        %v1157 = vadd.f32 0.0, %v1156
        %1158 = vmatmul.bf16.gmra.mxu0 %v1073
        %v1159 = vpop.f32.mrf.mxu0
        %v1160 = vadd.f32 0.0, %v1159
        %v1161 = vpop.f32.mrf.mxu0
        %v1162 = vadd.f32 0.0, %v1161
        %1163 = vmatmul.bf16.gmra.mxu0 %v1074
        %v1164 = vpop.f32.mrf.mxu0
        %v1165 = vadd.f32 0.0, %v1164
        %v1166 = vpop.f32.mrf.mxu0
        %v1167 = vadd.f32 0.0, %v1166
        %1168 = vmatmul.bf16.gmra.mxu0 %v1075
        %v1169 = vpop.f32.mrf.mxu0
        %v1170 = vadd.f32 0.0, %v1169
        %v1171 = vpop.f32.mrf.mxu0
        %v1172 = vadd.f32 0.0, %v1171
        %1173 = vmatmul.bf16.gmra.mxu0 %v1076
        %v1174 = vpop.f32.mrf.mxu0
        %v1175 = vadd.f32 0.0, %v1174
        %v1176 = vpop.f32.mrf.mxu0
        %v1177 = vadd.f32 0.0, %v1176
        %1178 = vmatmul.bf16.gmra.mxu0 %v1077
        %v1179 = vpop.f32.mrf.mxu0
        %v1180 = vadd.f32 0.0, %v1179
        %v1181 = vpop.f32.mrf.mxu0
        %v1182 = vadd.f32 0.0, %v1181
        %1183 = vdwg.mxu0
        %v1184 = vadd.f32 %v950, %v1096
        %v1185 = vadd.f32 %v999, %v1145
        %v1186 = vadd.f32 %v952, %v1098
        %v1187 = vadd.f32 %v1001, %v1147
        %v1188 = vadd.f32 %v955, %v1101
        %v1189 = vadd.f32 %v1004, %v1150
        %v1190 = vadd.f32 %v957, %v1103
        %v1191 = vadd.f32 %v1006, %v1152
        %v1192 = vadd.f32 %v960, %v1106
        %v1193 = vadd.f32 %v1009, %v1155
        %v1194 = vadd.f32 %v962, %v1108
        %v1195 = vadd.f32 %v1011, %v1157
        %v1196 = vadd.f32 %v965, %v1111
        %v1197 = vadd.f32 %v1014, %v1160
        %v1198 = vadd.f32 %v967, %v1113
        %v1199 = vadd.f32 %v1016, %v1162
        %v1200 = vadd.f32 %v970, %v1116
        %v1201 = vadd.f32 %v1019, %v1165
        %v1202 = vadd.f32 %v972, %v1118
        %v1203 = vadd.f32 %v1021, %v1167
        %v1204 = vadd.f32 %v975, %v1121
        %v1205 = vadd.f32 %v1024, %v1170
        %v1206 = vadd.f32 %v977, %v1123
        %v1207 = vadd.f32 %v1026, %v1172
        %v1208 = vadd.f32 %v980, %v1126
        %v1209 = vadd.f32 %v1029, %v1175
        %v1210 = vadd.f32 %v982, %v1128
        %v1211 = vadd.f32 %v1031, %v1177
        %v1212 = vadd.f32 %v985, %v1131
        %v1213 = vadd.f32 %v1034, %v1180
        %v1214 = vadd.f32 %v987, %v1133
        %v1215 = vadd.f32 %v1036, %v1182
        %v1216 = vld [vmem:[%s455] sm:$0x3]
        %vm1217 = vcmp.ne.s32.totalorder %v1216, 0
        %v1218 = vld [vmem:[%s445] sm:$0xff]
        %v1219 = vld [vmem:[%s445 + $0x8] sm:$0xff]
        %v1220 = vld [vmem:[%s445 + $0x10] sm:$0xff]
        %v1221 = vld [vmem:[%s445 + $0x18] sm:$0xff]
        %v1222 = vld [vmem:[%s445 + $0x20] sm:$0xff]
        %v1223 = vld [vmem:[%s445 + $0x28] sm:$0xff]
        %v1224 = vld [vmem:[%s445 + $0x30] sm:$0xff]
        %v1225 = vld [vmem:[%s445 + $0x38] sm:$0xff]
        %v1226 = vld [vmem:[%s445 + $0x40] sm:$0xff]
        %v1227 = vld [vmem:[%s445 + $0x48] sm:$0xff]
        %v1228 = vld [vmem:[%s445 + $0x50] sm:$0xff]
        %v1229 = vld [vmem:[%s445 + $0x58] sm:$0xff]
        %v1230 = vld [vmem:[%s445 + $0x60] sm:$0xff]
        %v1231 = vld [vmem:[%s445 + $0x68] sm:$0xff]
        %v1232 = vld [vmem:[%s445 + $0x70] sm:$0xff]
        %v1233 = vld [vmem:[%s445 + $0x78] sm:$0xff]
        %v1234 = vld [vmem:[%s450] sm:$0x3]
        %1235 = vset.pattern.permute.xlu0 0
        %1236 = vperm.xlu0 %1235, %v1218
        %v1237 = vpop.permute.xlu0 %1236
        %1238 = vset.pattern.permute.xlu0 0
        %1239 = vperm.xlu0 %1238, %v1219
        %v1240 = vpop.permute.xlu0 %1239
        %1241 = vset.pattern.permute.xlu0 0
        %1242 = vperm.xlu0 %1241, %v1220
        %v1243 = vpop.permute.xlu0 %1242
        %1244 = vset.pattern.permute.xlu0 0
        %1245 = vperm.xlu0 %1244, %v1221
        %v1246 = vpop.permute.xlu0 %1245
        %1247 = vset.pattern.permute.xlu0 0
        %1248 = vperm.xlu0 %1247, %v1222
        %v1249 = vpop.permute.xlu0 %1248
        %1250 = vset.pattern.permute.xlu0 0
        %1251 = vperm.xlu0 %1250, %v1223
        %v1252 = vpop.permute.xlu0 %1251
        %1253 = vset.pattern.permute.xlu0 0
        %1254 = vperm.xlu0 %1253, %v1224
        %v1255 = vpop.permute.xlu0 %1254
        %1256 = vset.pattern.permute.xlu0 0
        %1257 = vperm.xlu0 %1256, %v1225
        %v1258 = vpop.permute.xlu0 %1257
        %1259 = vset.pattern.permute.xlu0 0
        %1260 = vperm.xlu0 %1259, %v1226
        %v1261 = vpop.permute.xlu0 %1260
        %1262 = vset.pattern.permute.xlu0 0
        %1263 = vperm.xlu0 %1262, %v1227
        %v1264 = vpop.permute.xlu0 %1263
        %1265 = vset.pattern.permute.xlu0 0
        %1266 = vperm.xlu0 %1265, %v1228
        %v1267 = vpop.permute.xlu0 %1266
        %1268 = vset.pattern.permute.xlu0 0
        %1269 = vperm.xlu0 %1268, %v1229
        %v1270 = vpop.permute.xlu0 %1269
        %1271 = vset.pattern.permute.xlu0 0
        %1272 = vperm.xlu0 %1271, %v1230
        %v1273 = vpop.permute.xlu0 %1272
        %1274 = vset.pattern.permute.xlu0 0
        %1275 = vperm.xlu0 %1274, %v1231
        %v1276 = vpop.permute.xlu0 %1275
        %1277 = vset.pattern.permute.xlu0 0
        %1278 = vperm.xlu0 %1277, %v1232
        %v1279 = vpop.permute.xlu0 %1278
        %1280 = vset.pattern.permute.xlu0 0
        %1281 = vperm.xlu0 %1280, %v1233
        %v1282 = vpop.permute.xlu0 %1281
        %v1283 = vperm.slane %v1234, 0
        %v1284 = vperm.slane %v1234, 1
        %vm1285 = vcmp.eq.s32.totalorder %v1237, %v1283
        %vm1286 = vcmp.eq.s32.totalorder %v1237, %v1284
        %vm1287 = vcmp.eq.s32.totalorder %v1240, %v1283
        %vm1288 = vcmp.eq.s32.totalorder %v1240, %v1284
        %vm1289 = vcmp.eq.s32.totalorder %v1243, %v1283
        %vm1290 = vcmp.eq.s32.totalorder %v1243, %v1284
        %vm1291 = vcmp.eq.s32.totalorder %v1246, %v1283
        %vm1292 = vcmp.eq.s32.totalorder %v1246, %v1284
        %vm1293 = vcmp.eq.s32.totalorder %v1249, %v1283
        %vm1294 = vcmp.eq.s32.totalorder %v1249, %v1284
        %vm1295 = vcmp.eq.s32.totalorder %v1252, %v1283
        %vm1296 = vcmp.eq.s32.totalorder %v1252, %v1284
        %vm1297 = vcmp.eq.s32.totalorder %v1255, %v1283
        %vm1298 = vcmp.eq.s32.totalorder %v1255, %v1284
        %vm1299 = vcmp.eq.s32.totalorder %v1258, %v1283
        %vm1300 = vcmp.eq.s32.totalorder %v1258, %v1284
        %vm1301 = vcmp.eq.s32.totalorder %v1261, %v1283
        %vm1302 = vcmp.eq.s32.totalorder %v1261, %v1284
        %vm1303 = vcmp.eq.s32.totalorder %v1264, %v1283
        %vm1304 = vcmp.eq.s32.totalorder %v1264, %v1284
        %vm1305 = vcmp.eq.s32.totalorder %v1267, %v1283
        %vm1306 = vcmp.eq.s32.totalorder %v1267, %v1284
        %vm1307 = vcmp.eq.s32.totalorder %v1270, %v1283
        %vm1308 = vcmp.eq.s32.totalorder %v1270, %v1284
        %vm1309 = vcmp.eq.s32.totalorder %v1273, %v1283
        %vm1310 = vcmp.eq.s32.totalorder %v1273, %v1284
        %vm1311 = vcmp.eq.s32.totalorder %v1276, %v1283
        %vm1312 = vcmp.eq.s32.totalorder %v1276, %v1284
        %vm1313 = vcmp.eq.s32.totalorder %v1279, %v1283
        %vm1314 = vcmp.eq.s32.totalorder %v1279, %v1284
        %vm1315 = vcmp.eq.s32.totalorder %v1282, %v1283
        %vm1316 = vcmp.eq.s32.totalorder %v1282, %v1284
        %v1317 = vsel %vm1217, 1, 0
        %v1318 = vperm.slane %v1317, 0
        %v1319 = vperm.slane %v1317, 1
        %vm1320 = vcmp.eq.s32.totalorder %v1318, 1
        %vm1321 = vcmp.eq.s32.totalorder %v1319, 1
        %vm1322 = vmand %vm1285, %vm1320
        %vm1323 = vmand %vm1286, %vm1321
        %vm1324 = vmand %vm1287, %vm1320
        %vm1325 = vmand %vm1288, %vm1321
        %vm1326 = vmand %vm1289, %vm1320
        %vm1327 = vmand %vm1290, %vm1321
        %vm1328 = vmand %vm1291, %vm1320
        %vm1329 = vmand %vm1292, %vm1321
        %vm1330 = vmand %vm1293, %vm1320
        %vm1331 = vmand %vm1294, %vm1321
        %vm1332 = vmand %vm1295, %vm1320
        %vm1333 = vmand %vm1296, %vm1321
        %vm1334 = vmand %vm1297, %vm1320
        %vm1335 = vmand %vm1298, %vm1321
        %vm1336 = vmand %vm1299, %vm1320
        %vm1337 = vmand %vm1300, %vm1321
        %vm1338 = vmand %vm1301, %vm1320
        %vm1339 = vmand %vm1302, %vm1321
        %vm1340 = vmand %vm1303, %vm1320
        %vm1341 = vmand %vm1304, %vm1321
        %vm1342 = vmand %vm1305, %vm1320
        %vm1343 = vmand %vm1306, %vm1321
        %vm1344 = vmand %vm1307, %vm1320
        %vm1345 = vmand %vm1308, %vm1321
        %vm1346 = vmand %vm1309, %vm1320
        %vm1347 = vmand %vm1310, %vm1321
        %vm1348 = vmand %vm1311, %vm1320
        %vm1349 = vmand %vm1312, %vm1321
        %vm1350 = vmand %vm1313, %vm1320
        %vm1351 = vmand %vm1314, %vm1321
        %vm1352 = vmand %vm1315, %vm1320
        %vm1353 = vmand %vm1316, %vm1321
        %v1354 = vsub.f32 %v1184, 2.0
        %v1355 = vsub.f32 %v1185, 2.0
        %v1356 = vsub.f32 %v1186, 2.0
        %v1357 = vsub.f32 %v1187, 2.0
        %v1358 = vsub.f32 %v1188, 2.0
        %v1359 = vsub.f32 %v1189, 2.0
        %v1360 = vsub.f32 %v1190, 2.0
        %v1361 = vsub.f32 %v1191, 2.0
        %v1362 = vsub.f32 %v1192, 2.0
        %v1363 = vsub.f32 %v1193, 2.0
        %v1364 = vsub.f32 %v1194, 2.0
        %v1365 = vsub.f32 %v1195, 2.0
        %v1366 = vsub.f32 %v1196, 2.0
        %v1367 = vsub.f32 %v1197, 2.0
        %v1368 = vsub.f32 %v1198, 2.0
        %v1369 = vsub.f32 %v1199, 2.0
        %v1370 = vsub.f32 %v1200, 2.0
        %v1371 = vsub.f32 %v1201, 2.0
        %v1372 = vsub.f32 %v1202, 2.0
        %v1373 = vsub.f32 %v1203, 2.0
        %v1374 = vsub.f32 %v1204, 2.0
        %v1375 = vsub.f32 %v1205, 2.0
        %v1376 = vsub.f32 %v1206, 2.0
        %v1377 = vsub.f32 %v1207, 2.0
        %v1378 = vsub.f32 %v1208, 2.0
        %v1379 = vsub.f32 %v1209, 2.0
        %v1380 = vsub.f32 %v1210, 2.0
        %v1381 = vsub.f32 %v1211, 2.0
        %v1382 = vsub.f32 %v1212, 2.0
        %v1383 = vsub.f32 %v1213, 2.0
        %v1384 = vsub.f32 %v1214, 2.0
        %v1385 = vsub.f32 %v1215, 2.0
        %v1386 = vmul.f32 %v1354, 1.442695
        %v1387 = vpow.pop %v1386
        %v1388 = vmul.f32 %v1355, 1.442695
        %v1389 = vpow.pop %v1388
        %v1390 = vmul.f32 %v1356, 1.442695
        %v1391 = vpow.pop %v1390
        %v1392 = vmul.f32 %v1357, 1.442695
        %v1393 = vpow.pop %v1392
        %v1394 = vmul.f32 %v1358, 1.442695
        %v1395 = vpow.pop %v1394
        %v1396 = vmul.f32 %v1359, 1.442695
        %v1397 = vpow.pop %v1396
        %v1398 = vmul.f32 %v1360, 1.442695
        %v1399 = vpow.pop %v1398
        %v1400 = vmul.f32 %v1361, 1.442695
        %v1401 = vpow.pop %v1400
        %v1402 = vmul.f32 %v1362, 1.442695
        %v1403 = vpow.pop %v1402
        %v1404 = vmul.f32 %v1363, 1.442695
        %v1405 = vpow.pop %v1404
        %v1406 = vmul.f32 %v1364, 1.442695
        %v1407 = vpow.pop %v1406
        %v1408 = vmul.f32 %v1365, 1.442695
        %v1409 = vpow.pop %v1408
        %v1410 = vmul.f32 %v1366, 1.442695
        %v1411 = vpow.pop %v1410
        %v1412 = vmul.f32 %v1367, 1.442695
        %v1413 = vpow.pop %v1412
        %v1414 = vmul.f32 %v1368, 1.442695
        %v1415 = vpow.pop %v1414
        %v1416 = vmul.f32 %v1369, 1.442695
        %v1417 = vpow.pop %v1416
        %v1418 = vmul.f32 %v1370, 1.442695
        %v1419 = vpow.pop %v1418
        %v1420 = vmul.f32 %v1371, 1.442695
        %v1421 = vpow.pop %v1420
        %v1422 = vmul.f32 %v1372, 1.442695
        %v1423 = vpow.pop %v1422
        %v1424 = vmul.f32 %v1373, 1.442695
        %v1425 = vpow.pop %v1424
        %v1426 = vmul.f32 %v1374, 1.442695
        %v1427 = vpow.pop %v1426
        %v1428 = vmul.f32 %v1375, 1.442695
        %v1429 = vpow.pop %v1428
        %v1430 = vmul.f32 %v1376, 1.442695
        %v1431 = vpow.pop %v1430
        %v1432 = vmul.f32 %v1377, 1.442695
        %v1433 = vpow.pop %v1432
        %v1434 = vmul.f32 %v1378, 1.442695
        %v1435 = vpow.pop %v1434
        %v1436 = vmul.f32 %v1379, 1.442695
        %v1437 = vpow.pop %v1436
        %v1438 = vmul.f32 %v1380, 1.442695
        %v1439 = vpow.pop %v1438
        %v1440 = vmul.f32 %v1381, 1.442695
        %v1441 = vpow.pop %v1440
        %v1442 = vmul.f32 %v1382, 1.442695
        %v1443 = vpow.pop %v1442
        %v1444 = vmul.f32 %v1383, 1.442695
        %v1445 = vpow.pop %v1444
        %v1446 = vmul.f32 %v1384, 1.442695
        %v1447 = vpow.pop %v1446
        %v1448 = vmul.f32 %v1385, 1.442695
        %v1449 = vpow.pop %v1448
        %v1450 = vsel %vm1320, %v1387, 0.0
        %v1451 = vsel %vm1321, %v1389, 0.0
        %v1452 = vsel %vm1320, %v1391, 0.0
        %v1453 = vsel %vm1321, %v1393, 0.0
        %v1454 = vsel %vm1320, %v1395, 0.0
        %v1455 = vsel %vm1321, %v1397, 0.0
        %v1456 = vsel %vm1320, %v1399, 0.0
        %v1457 = vsel %vm1321, %v1401, 0.0
        %v1458 = vsel %vm1320, %v1403, 0.0
        %v1459 = vsel %vm1321, %v1405, 0.0
        %v1460 = vsel %vm1320, %v1407, 0.0
        %v1461 = vsel %vm1321, %v1409, 0.0
        %v1462 = vsel %vm1320, %v1411, 0.0
        %v1463 = vsel %vm1321, %v1413, 0.0
        %v1464 = vsel %vm1320, %v1415, 0.0
        %v1465 = vsel %vm1321, %v1417, 0.0
        %v1466 = vsel %vm1320, %v1419, 0.0
        %v1467 = vsel %vm1321, %v1421, 0.0
        %v1468 = vsel %vm1320, %v1423, 0.0
        %v1469 = vsel %vm1321, %v1425, 0.0
        %v1470 = vsel %vm1320, %v1427, 0.0
        %v1471 = vsel %vm1321, %v1429, 0.0
        %v1472 = vsel %vm1320, %v1431, 0.0
        %v1473 = vsel %vm1321, %v1433, 0.0
        %v1474 = vsel %vm1320, %v1435, 0.0
        %v1475 = vsel %vm1321, %v1437, 0.0
        %v1476 = vsel %vm1320, %v1439, 0.0
        %v1477 = vsel %vm1321, %v1441, 0.0
        %v1478 = vsel %vm1320, %v1443, 0.0
        %v1479 = vsel %vm1321, %v1445, 0.0
        %v1480 = vsel %vm1320, %v1447, 0.0
        %v1481 = vsel %vm1321, %v1449, 0.0
        %v1482 = vld [vmem:[%s461] sm:$0xff]
        %v1483 = vld [vmem:[%s461 + $0x8] sm:$0xff]
        %v1484 = vld [vmem:[%s461 + $0x10] sm:$0xff]
        %v1485 = vld [vmem:[%s461 + $0x18] sm:$0xff]
        %v1486 = vld [vmem:[%s461 + $0x20] sm:$0xff]
        %v1487 = vld [vmem:[%s461 + $0x28] sm:$0xff]
        %v1488 = vld [vmem:[%s461 + $0x30] sm:$0xff]
        %v1489 = vld [vmem:[%s461 + $0x38] sm:$0xff]
        %v1490 = vld [vmem:[%s461 + $0x40] sm:$0xff]
        %v1491 = vld [vmem:[%s461 + $0x48] sm:$0xff]
        %v1492 = vld [vmem:[%s461 + $0x50] sm:$0xff]
        %v1493 = vld [vmem:[%s461 + $0x58] sm:$0xff]
        %v1494 = vld [vmem:[%s461 + $0x60] sm:$0xff]
        %v1495 = vld [vmem:[%s461 + $0x68] sm:$0xff]
        %v1496 = vld [vmem:[%s461 + $0x70] sm:$0xff]
        %v1497 = vld [vmem:[%s461 + $0x78] sm:$0xff]
        %v1498 = vadd.f32 %v1450, %v1451
        %1499 = vadd.xlane.f32.xlu0 %v1498
        %v1500 = vpop.xlane.xlu0 %1499
        %v1501 = vadd.f32 %v1452, %v1453
        %1502 = vadd.xlane.f32.xlu0 %v1501
        %v1503 = vpop.xlane.xlu0 %1502
        %v1504 = vadd.f32 %v1454, %v1455
        %1505 = vadd.xlane.f32.xlu0 %v1504
        %v1506 = vpop.xlane.xlu0 %1505
        %v1507 = vadd.f32 %v1456, %v1457
        %1508 = vadd.xlane.f32.xlu0 %v1507
        %v1509 = vpop.xlane.xlu0 %1508
        %v1510 = vadd.f32 %v1458, %v1459
        %1511 = vadd.xlane.f32.xlu0 %v1510
        %v1512 = vpop.xlane.xlu0 %1511
        %v1513 = vadd.f32 %v1460, %v1461
        %1514 = vadd.xlane.f32.xlu0 %v1513
        %v1515 = vpop.xlane.xlu0 %1514
        %v1516 = vadd.f32 %v1462, %v1463
        %1517 = vadd.xlane.f32.xlu0 %v1516
        %v1518 = vpop.xlane.xlu0 %1517
        %v1519 = vadd.f32 %v1464, %v1465
        %1520 = vadd.xlane.f32.xlu0 %v1519
        %v1521 = vpop.xlane.xlu0 %1520
        %v1522 = vadd.f32 %v1466, %v1467
        %1523 = vadd.xlane.f32.xlu0 %v1522
        %v1524 = vpop.xlane.xlu0 %1523
        %v1525 = vadd.f32 %v1468, %v1469
        %1526 = vadd.xlane.f32.xlu0 %v1525
        %v1527 = vpop.xlane.xlu0 %1526
        %v1528 = vadd.f32 %v1470, %v1471
        %1529 = vadd.xlane.f32.xlu0 %v1528
        %v1530 = vpop.xlane.xlu0 %1529
        %v1531 = vadd.f32 %v1472, %v1473
        %1532 = vadd.xlane.f32.xlu0 %v1531
        %v1533 = vpop.xlane.xlu0 %1532
        %v1534 = vadd.f32 %v1474, %v1475
        %1535 = vadd.xlane.f32.xlu0 %v1534
        %v1536 = vpop.xlane.xlu0 %1535
        %v1537 = vadd.f32 %v1476, %v1477
        %1538 = vadd.xlane.f32.xlu0 %v1537
        %v1539 = vpop.xlane.xlu0 %1538
        %v1540 = vadd.f32 %v1478, %v1479
        %1541 = vadd.xlane.f32.xlu0 %v1540
        %v1542 = vpop.xlane.xlu0 %1541
        %v1543 = vadd.f32 %v1480, %v1481
        %1544 = vadd.xlane.f32.xlu0 %v1543
        %v1545 = vpop.xlane.xlu0 %1544
        %v1546 = vadd.f32 %v1482, %v1500
        %v1547 = vadd.f32 %v1483, %v1503
        %v1548 = vadd.f32 %v1484, %v1506
        %v1549 = vadd.f32 %v1485, %v1509
        %v1550 = vadd.f32 %v1486, %v1512
        %v1551 = vadd.f32 %v1487, %v1515
        %v1552 = vadd.f32 %v1488, %v1518
        %v1553 = vadd.f32 %v1489, %v1521
        %v1554 = vadd.f32 %v1490, %v1524
        %v1555 = vadd.f32 %v1491, %v1527
        %v1556 = vadd.f32 %v1492, %v1530
        %v1557 = vadd.f32 %v1493, %v1533
        %v1558 = vadd.f32 %v1494, %v1536
        %v1559 = vadd.f32 %v1495, %v1539
        %v1560 = vadd.f32 %v1496, %v1542
        %v1561 = vadd.f32 %v1497, %v1545
        %vm1562 = vcmask 7168
        %1563 = vst.msk [vmem:[%s461] sm:$0xff] %vm1562, %v1546
        %1564 = vst.msk [vmem:[%s461 + $0x8] sm:$0xff] %vm1562, %v1547
        %1565 = vst.msk [vmem:[%s461 + $0x10] sm:$0xff] %vm1562, %v1548
        %1566 = vst.msk [vmem:[%s461 + $0x18] sm:$0xff] %vm1562, %v1549
        %1567 = vst.msk [vmem:[%s461 + $0x20] sm:$0xff] %vm1562, %v1550
        %1568 = vst.msk [vmem:[%s461 + $0x28] sm:$0xff] %vm1562, %v1551
        %1569 = vst.msk [vmem:[%s461 + $0x30] sm:$0xff] %vm1562, %v1552
        %1570 = vst.msk [vmem:[%s461 + $0x38] sm:$0xff] %vm1562, %v1553
        %1571 = vst.msk [vmem:[%s461 + $0x40] sm:$0xff] %vm1562, %v1554
        %1572 = vst.msk [vmem:[%s461 + $0x48] sm:$0xff] %vm1562, %v1555
        %1573 = vst.msk [vmem:[%s461 + $0x50] sm:$0xff] %vm1562, %v1556
        %1574 = vst.msk [vmem:[%s461 + $0x58] sm:$0xff] %vm1562, %v1557
        %1575 = vst.msk [vmem:[%s461 + $0x60] sm:$0xff] %vm1562, %v1558
        %1576 = vst.msk [vmem:[%s461 + $0x68] sm:$0xff] %vm1562, %v1559
        %1577 = vst.msk [vmem:[%s461 + $0x70] sm:$0xff] %vm1562, %v1560
        %1578 = vst.msk [vmem:[%s461 + $0x78] sm:$0xff] %vm1562, %v1561
        %v1579 = vld [vmem:[%s467] sm:$0xff]
        %v1580 = vld [vmem:[%s467 + $0x8] sm:$0xff]
        %v1581 = vld [vmem:[%s467 + $0x10] sm:$0xff]
        %v1582 = vld [vmem:[%s467 + $0x18] sm:$0xff]
        %v1583 = vld [vmem:[%s467 + $0x20] sm:$0xff]
        %v1584 = vld [vmem:[%s467 + $0x28] sm:$0xff]
        %v1585 = vld [vmem:[%s467 + $0x30] sm:$0xff]
        %v1586 = vld [vmem:[%s467 + $0x38] sm:$0xff]
        %v1587 = vld [vmem:[%s467 + $0x40] sm:$0xff]
        %v1588 = vld [vmem:[%s467 + $0x48] sm:$0xff]
        %v1589 = vld [vmem:[%s467 + $0x50] sm:$0xff]
        %v1590 = vld [vmem:[%s467 + $0x58] sm:$0xff]
        %v1591 = vld [vmem:[%s467 + $0x60] sm:$0xff]
        %v1592 = vld [vmem:[%s467 + $0x68] sm:$0xff]
        %v1593 = vld [vmem:[%s467 + $0x70] sm:$0xff]
        %v1594 = vld [vmem:[%s467 + $0x78] sm:$0xff]
        %v1595 = vsel %vm1322, %v1184, 0.0
        %v1596 = vsel %vm1323, %v1185, 0.0
        %v1597 = vsel %vm1324, %v1186, 0.0
        %v1598 = vsel %vm1325, %v1187, 0.0
        %v1599 = vsel %vm1326, %v1188, 0.0
        %v1600 = vsel %vm1327, %v1189, 0.0
        %v1601 = vsel %vm1328, %v1190, 0.0
        %v1602 = vsel %vm1329, %v1191, 0.0
        %v1603 = vsel %vm1330, %v1192, 0.0
        %v1604 = vsel %vm1331, %v1193, 0.0
        %v1605 = vsel %vm1332, %v1194, 0.0
        %v1606 = vsel %vm1333, %v1195, 0.0
        %v1607 = vsel %vm1334, %v1196, 0.0
        %v1608 = vsel %vm1335, %v1197, 0.0
        %v1609 = vsel %vm1336, %v1198, 0.0
        %v1610 = vsel %vm1337, %v1199, 0.0
        %v1611 = vsel %vm1338, %v1200, 0.0
        %v1612 = vsel %vm1339, %v1201, 0.0
        %v1613 = vsel %vm1340, %v1202, 0.0
        %v1614 = vsel %vm1341, %v1203, 0.0
        %v1615 = vsel %vm1342, %v1204, 0.0
        %v1616 = vsel %vm1343, %v1205, 0.0
        %v1617 = vsel %vm1344, %v1206, 0.0
        %v1618 = vsel %vm1345, %v1207, 0.0
        %v1619 = vsel %vm1346, %v1208, 0.0
        %v1620 = vsel %vm1347, %v1209, 0.0
        %v1621 = vsel %vm1348, %v1210, 0.0
        %v1622 = vsel %vm1349, %v1211, 0.0
        %v1623 = vsel %vm1350, %v1212, 0.0
        %v1624 = vsel %vm1351, %v1213, 0.0
        %v1625 = vsel %vm1352, %v1214, 0.0
        %v1626 = vsel %vm1353, %v1215, 0.0
        %v1627 = vadd.f32 %v1595, %v1596
        %1628 = vadd.xlane.f32.xlu0 %v1627
        %v1629 = vpop.xlane.xlu0 %1628
        %v1630 = vadd.f32 %v1597, %v1598
        %1631 = vadd.xlane.f32.xlu0 %v1630
        %v1632 = vpop.xlane.xlu0 %1631
        %v1633 = vadd.f32 %v1599, %v1600
        %1634 = vadd.xlane.f32.xlu0 %v1633
        %v1635 = vpop.xlane.xlu0 %1634
        %v1636 = vadd.f32 %v1601, %v1602
        %1637 = vadd.xlane.f32.xlu0 %v1636
        %v1638 = vpop.xlane.xlu0 %1637
        %v1639 = vadd.f32 %v1603, %v1604
        %1640 = vadd.xlane.f32.xlu0 %v1639
        %v1641 = vpop.xlane.xlu0 %1640
        %v1642 = vadd.f32 %v1605, %v1606
        %1643 = vadd.xlane.f32.xlu0 %v1642
        %v1644 = vpop.xlane.xlu0 %1643
        %v1645 = vadd.f32 %v1607, %v1608
        %1646 = vadd.xlane.f32.xlu0 %v1645
        %v1647 = vpop.xlane.xlu0 %1646
        %v1648 = vadd.f32 %v1609, %v1610
        %1649 = vadd.xlane.f32.xlu0 %v1648
        %v1650 = vpop.xlane.xlu0 %1649
        %v1651 = vadd.f32 %v1611, %v1612
        %1652 = vadd.xlane.f32.xlu0 %v1651
        %v1653 = vpop.xlane.xlu0 %1652
        %v1654 = vadd.f32 %v1613, %v1614
        %1655 = vadd.xlane.f32.xlu0 %v1654
        %v1656 = vpop.xlane.xlu0 %1655
        %v1657 = vadd.f32 %v1615, %v1616
        %1658 = vadd.xlane.f32.xlu0 %v1657
        %v1659 = vpop.xlane.xlu0 %1658
        %v1660 = vadd.f32 %v1617, %v1618
        %1661 = vadd.xlane.f32.xlu0 %v1660
        %v1662 = vpop.xlane.xlu0 %1661
        %v1663 = vadd.f32 %v1619, %v1620
        %1664 = vadd.xlane.f32.xlu0 %v1663
        %v1665 = vpop.xlane.xlu0 %1664
        %v1666 = vadd.f32 %v1621, %v1622
        %1667 = vadd.xlane.f32.xlu0 %v1666
        %v1668 = vpop.xlane.xlu0 %1667
        %v1669 = vadd.f32 %v1623, %v1624
        %1670 = vadd.xlane.f32.xlu0 %v1669
        %v1671 = vpop.xlane.xlu0 %1670
        %v1672 = vadd.f32 %v1625, %v1626
        %1673 = vadd.xlane.f32.xlu0 %v1672
        %v1674 = vpop.xlane.xlu0 %1673
        %v1675 = vadd.f32 %v1579, %v1629
        %v1676 = vadd.f32 %v1580, %v1632
        %v1677 = vadd.f32 %v1581, %v1635
        %v1678 = vadd.f32 %v1582, %v1638
        %v1679 = vadd.f32 %v1583, %v1641
        %v1680 = vadd.f32 %v1584, %v1644
        %v1681 = vadd.f32 %v1585, %v1647
        %v1682 = vadd.f32 %v1586, %v1650
        %v1683 = vadd.f32 %v1587, %v1653
        %v1684 = vadd.f32 %v1588, %v1656
        %v1685 = vadd.f32 %v1589, %v1659
        %v1686 = vadd.f32 %v1590, %v1662
        %v1687 = vadd.f32 %v1591, %v1665
        %v1688 = vadd.f32 %v1592, %v1668
        %v1689 = vadd.f32 %v1593, %v1671
        %v1690 = vadd.f32 %v1594, %v1674
        %1691 = vst.msk [vmem:[%s467] sm:$0xff] %vm1562, %v1675
        %1692 = vst.msk [vmem:[%s467 + $0x8] sm:$0xff] %vm1562, %v1676
        %1693 = vst.msk [vmem:[%s467 + $0x10] sm:$0xff] %vm1562, %v1677
        %1694 = vst.msk [vmem:[%s467 + $0x18] sm:$0xff] %vm1562, %v1678
        %1695 = vst.msk [vmem:[%s467 + $0x20] sm:$0xff] %vm1562, %v1679
        %1696 = vst.msk [vmem:[%s467 + $0x28] sm:$0xff] %vm1562, %v1680
        %1697 = vst.msk [vmem:[%s467 + $0x30] sm:$0xff] %vm1562, %v1681
        %1698 = vst.msk [vmem:[%s467 + $0x38] sm:$0xff] %vm1562, %v1682
        %1699 = vst.msk [vmem:[%s467 + $0x40] sm:$0xff] %vm1562, %v1683
        %1700 = vst.msk [vmem:[%s467 + $0x48] sm:$0xff] %vm1562, %v1684
        %1701 = vst.msk [vmem:[%s467 + $0x50] sm:$0xff] %vm1562, %v1685
        %1702 = vst.msk [vmem:[%s467 + $0x58] sm:$0xff] %vm1562, %v1686
        %1703 = vst.msk [vmem:[%s467 + $0x60] sm:$0xff] %vm1562, %v1687
        %1704 = vst.msk [vmem:[%s467 + $0x68] sm:$0xff] %vm1562, %v1688
        %1705 = vst.msk [vmem:[%s467 + $0x70] sm:$0xff] %vm1562, %v1689
        %1706 = vst.msk [vmem:[%s467 + $0x78] sm:$0xff] %vm1562, %v1690
        %s1707 = smul.u32 16, %s26
        %p1708 = scmp.lt.s32.totalorder %s1707, 31
        %s1709 = scalar_select %p1708, %s1707, 31
        %s1710 = smul.addr %s1709, 8
        %s1711 = scalar_lea.vmem %s7, %s1710
        %s1712 = smul.u32 16, %s26
        %p1713 = scmp.lt.s32.totalorder %s1712, 31
        %s1714 = scalar_select %p1713, %s1712, 31
        %s1715 = smul.addr %s1714, 8
        %s1716 = scalar_lea.vmem %s8, %s1715
        // Predicated region
        $region61: #{tpu_custom_call.1} parent=47 // pred_check
          %p1717 = pneg %p234
        $region62: #{tpu_custom_call.1} parent=47 // pred_check_branch
          %1719 = sbr.rel (%p1717) target = $region64
        $region63: #{tpu_custom_call.1} parent=47 // pred_region
          %s1720 = smul.u32 16, %s26
        $region64: #{tpu_custom_call.1} parent=47 // pred_fallthru
          _
        // Predicated region
        $region65: #{tpu_custom_call.1} parent=47 // pred_check
          %p1721 = pneg %p260
        $region66: #{tpu_custom_call.1} parent=47 // pred_check_branch
          %1723 = sbr.rel (%p1721) target = $region68
        $region67: #{tpu_custom_call.1} parent=47 // pred_region
          %s1724 = smul.u32 16, %s26
        $region68: #{tpu_custom_call.1} parent=47 // pred_fallthru
          _
      $region48: #{tpu_custom_call.1} parent=5 // pred_fallthru
        _
      %p1725 = scmp.le.s32.totalorder 2, %s17
      // Predicated region
      $region69: #{tpu_custom_call.1} parent=5 // pred_check
        %p1726 = pneg %p1725
      $region70: #{tpu_custom_call.1} parent=5 // pred_check_branch
        %1728 = sbr.rel (%p1726) target = $region72
      $region71: #{tpu_custom_call.1} parent=5 // pred_region
        %s1729 = ssub.s32 %s17, 2
        // Predicated region
        $region73: #{tpu_custom_call.1} parent=71 // pred_check
          %p1730 = pneg %p240
        $region74: #{tpu_custom_call.1} parent=71 // pred_check_branch
          %1732 = sbr.rel (%p1730) target = $region76
        $region75: #{tpu_custom_call.1} parent=71 // pred_region
          %s1733 = smul.u32 16, %s28
          %p1734 = scmp.lt.s32.totalorder %s1733, 31
          %s1735 = scalar_select %p1734, %s1733, 31
          %s1736 = smul.addr %s1735, 8
          %s1737 = scalar_lea.vmem %s7, %s1736
        $region76: #{tpu_custom_call.1} parent=71 // pred_fallthru
          _
        // Predicated region
        $region77: #{tpu_custom_call.1} parent=71 // pred_check
          %p1738 = pneg %p266
        $region78: #{tpu_custom_call.1} parent=71 // pred_check_branch
          %1740 = sbr.rel (%p1738) target = $region80
        $region79: #{tpu_custom_call.1} parent=71 // pred_region
          %s1741 = smul.u32 16, %s28
          %p1742 = scmp.lt.s32.totalorder %s1741, 31
          %s1743 = scalar_select %p1742, %s1741, 31
          %s1744 = smul.addr %s1743, 8
          %s1745 = scalar_lea.vmem %s8, %s1744
        $region80: #{tpu_custom_call.1} parent=71 // pred_fallthru
          _
      $region72: #{tpu_custom_call.1} parent=5 // pred_fallthru
        _
    $region6: #{tpu_custom_call.1} parent=1 // loop_footer
      %s21 = sadd.s32 1, %s17
    $region7: #{tpu_custom_call.1} parent=1 // loop_footer_branch
      %16 = sbr.rel target = $region3
    $region8: #{tpu_custom_call.1} parent=1 // loop_exit
      _
    %1746 = vsyncpa [#allocation3], 1
    %s1747 = scalar_lea.sflag [#allocation3], 1
    %1748 = vsyncpa %s1747, 1
    %1749 = vsyncpa [#allocation5], 1

</llo_original>
